<compile_context>
chip_gen: v6e
topology: v6e:2x2x1
jax: 0.10.0
libtpu: 0.0.40
codegen_flags: <defaults>
</compile_context>

<pallas_src>
import functools

import jax
import jax.numpy as jnp
from jax import lax
from jax.experimental import pallas as pl
from jax.experimental.pallas import tpu as pltpu

LANE = 128
SUBLANE_BF16 = 16


def _round_up(n, m):
    return ((n + m - 1) // m) * m


# --------------------------------- kernel ---------------------------------

def _residual_block_kernel(x_ref, w1_ref, b1_ref, w2_ref, b2_ref, *rest,
                           k, dilation, tl, pad, hr, nt, has_downsample):
    """One (batch, L-tile) per grid step.

    x_ref  : (1, TL, C_in_p)        bf16 input tile (channels-last, channel-padded)
    w1_ref : (k*C_in_p,  C_out_p)   bf16 tap-folded, weight-normed conv1 weights
    w2_ref : (k*C_out_p, C_out_p)   bf16 tap-folded, weight-normed conv2 weights
    b*_ref : (1, C_out_p)           f32
    wd_ref : (C_in_p, C_out_p)      bf16 1x1 downsample (only passed if needed)
    out_ref: (1, TL, C_out_p)       bf16 (or f32)
    scratch (only when k > 1):
      xe_ref : (hr + TL, C_in_p)    bf16   [aligned halo | current input tile]
      he_ref : (hr + TL, C_out_p)   bf16   [aligned halo | current conv1 output]
      x1_ref : (TL, k*C_in_p)       bf16   tap-folded conv1 LHS slab
      h2_ref : (TL, k*C_out_p)      bf16   tap-folded conv2 LHS slab
    """
    if has_downsample:
        wd_ref, bd_ref = rest[0], rest[1]
        rest = rest[2:]
    else:
        wd_ref = bd_ref = None
    out_ref = rest[0]
    scratch = rest[1:]

    x_tile = x_ref[0]                                   # (TL, C_in_p) bf16
    c_in = x_tile.shape[1]
    c_out = out_ref.shape[2]

    if k == 1:
        # pad == 0: plain 1x1 convs; no halo / tap-folding machinery needed.
        acc = jnp.dot(x_tile, w1_ref[...],
                      preferred_element_type=jnp.float32) + b1_ref[...]
        h = jnp.maximum(acc, 0.0)                       # dropout == identity
        acc2 = jnp.dot(h.astype(jnp.bfloat16), w2_ref[...],
                       preferred_element_type=jnp.float32) + b2_ref[...]
        y = jnp.maximum(acc2, 0.0)
    else:
        xe_ref, he_ref, x1_ref, h2_ref = scratch
        j = pl.program_id(1)

        # At the start of every sequence the causal left-pad is a zeroed halo.
        @pl.when(j == 0)
        def _zero_halo():
            xe_ref[0:hr, :] = jnp.zeros((hr, c_in), xe_ref.dtype)
            he_ref[0:hr, :] = jnp.zeros((hr, c_out), he_ref.dtype)

        # Stage the current input tile at the 16-row-aligned offset after the halo.
        xe_ref[hr:hr + tl, :] = x_tile

        # ---- conv1 (causal, dilated): fold k taps into the contraction dim ----
        x1_ref[:, (k - 1) * c_in:k * c_in] = x_tile     # last tap is the tile itself
        for t in range(k - 1):                          # k small & static
            off = hr - pad + t * dilation
            x1_ref[:, t * c_in:(t + 1) * c_in] = xe_ref[off:off + tl, :]
        acc = jnp.dot(x1_ref[...], w1_ref[...],
                      preferred_element_type=jnp.float32) + b1_ref[...]
        h = jnp.maximum(acc, 0.0)                       # ReLU (dropout == identity)
        hb = h.astype(jnp.bfloat16)

        # ---- conv2 (same tap folding on the conv1 activations) ----
        he_ref[hr:hr + tl, :] = hb
        h2_ref[:, (k - 1) * c_out:k * c_out] = hb
        for t in range(k - 1):
            off = hr - pad + t * dilation
            h2_ref[:, t * c_out:(t + 1) * c_out] = he_ref[off:off + tl, :]
        acc2 = jnp.dot(h2_ref[...], w2_ref[...],
                       preferred_element_type=jnp.float32) + b2_ref[...]
        y = jnp.maximum(acc2, 0.0)

        # ---- carry the causal halo to the next L-tile ----
        # Sublane-aligned copy; src [tl, tl+hr) and dst [0, hr) are disjoint
        # because tl >= hr is enforced whenever nt > 1.
        if nt > 1:
            xe_ref[0:hr, :] = xe_ref[tl:tl + hr, :]
            he_ref[0:hr, :] = he_ref[tl:tl + hr, :]

    # ---- residual branch (1x1 conv if channel counts differ) + final ReLU ----
    if has_downsample:
        res = jnp.dot(x_tile, wd_ref[...],
                      preferred_element_type=jnp.float32) + bd_ref[...]
    else:
        res = x_tile.astype(jnp.float32)
    out_ref[0] = jnp.maximum(y + res, 0.0).astype(out_ref.dtype)


# --------------------------- parameter preparation ---------------------------

def prepare_params(params, *, kernel_size):
    """Convert PyTorch-layout (C_out, C_in, K) weight-normed weights into
    channel-padded, tap-folded bf16 kernel operands.  Call once per block."""
    w1, b1, w2, b2, wd, bd = params
    C_out, C_in, K = w1.shape
    assert K == kernel_size
    C_in_p = _round_up(C_in, LANE)
    C_out_p = _round_up(C_out, LANE)

    def fold(w, cin, cin_p):                       # (C_out, cin, K) -> (K*cin_p, C_out_p)
        wk = jnp.transpose(w, (2, 1, 0))           # tap-major (K, cin, C_out)
        wk = jnp.pad(wk, ((0, 0), (0, cin_p - cin), (0, C_out_p - C_out)))
        return wk.reshape(K * cin_p, C_out_p).astype(jnp.bfloat16)

    w1_f = fold(w1, C_in, C_in_p)
    w2_f = fold(w2, C_out, C_out_p)
    b1_p = jnp.pad(b1, (0, C_out_p - C_out)).reshape(1, C_out_p).astype(jnp.float32)
    b2_p = jnp.pad(b2, (0, C_out_p - C_out)).reshape(1, C_out_p).astype(jnp.float32)
    if wd is not None:
        wd_p = jnp.pad(wd[:, :, 0].T,
                       ((0, C_in_p - C_in), (0, C_out_p - C_out))).astype(jnp.bfloat16)
        bd_p = jnp.pad(bd, (0, C_out_p - C_out)).reshape(1, C_out_p).astype(jnp.float32)
    else:
        wd_p = bd_p = None
    return dict(w1=w1_f, b1=b1_p, w2=w2_f, b2=b2_p, wd=wd_p, bd=bd_p,
                c_in=C_in, c_out=C_out, c_in_p=C_in_p, c_out_p=C_out_p, k=K)


# ------------------------------ forward wrappers ------------------------------

def residual_block_forward_nlc(x_nlc, kp, *, dilation, padding, tile_l=1024,
                               out_dtype=jnp.bfloat16):
    """Channels-last path.  x_nlc: (B, L, C_in_p) bf16, channel-padded with the
    junk channels zero.  Returns (B, L, C_out_p) `out_dtype`, channels-last, so
    stacked residual blocks never pay an NCL<->NLC layout pass per block."""
    B, L, C_in_p = x_nlc.shape
    assert x_nlc.dtype == jnp.bfloat16 and C_in_p == kp["c_in_p"]
    k, C_out_p = kp["k"], kp["c_out_p"]
    assert padding == dilation * (k - 1), "causal TCN residual requires padding=(k-1)*dilation"
    has_downsample = kp["wd"] is not None

    pad = padding
    hr = _round_up(pad, SUBLANE_BF16) if pad > 0 else 0
    out_bytes = jnp.dtype(out_dtype).itemsize

    def vmem_bytes(tl_):
        bf = 2
        b_in = 2 * tl_ * C_in_p * bf                                # x double buffer
        b_w = 2 * (k * C_in_p * C_out_p + k * C_out_p * C_out_p) * bf
        if has_downsample:
            b_w += 2 * C_in_p * C_out_p * bf
        b_b = 6 * C_out_p * 4
        b_out = 2 * tl_ * C_out_p * out_bytes                       # out double buffer
        b_scr = 0
        if k > 1:
            b_scr = ((hr + tl_) * (C_in_p + C_out_p) * bf
                     + tl_ * k * (C_in_p + C_out_p) * bf)
        return b_in + b_w + b_b + b_out + b_scr

    # ---- choose the L-tile: multiple of 16, >= rounded halo, within ~48 MiB ----
    BUDGET = 48 * 1024 * 1024
    if L <= tile_l:
        TL = L
    else:
        assert tile_l % SUBLANE_BF16 == 0, "tile_l must be a multiple of 16"
        TL = max(tile_l, hr)
    while L > TL and vmem_bytes(TL) > BUDGET and TL % 32 == 0 and TL // 2 >= max(hr, SUBLANE_BF16):
        TL //= 2
    if L > TL:
        assert TL >= hr and TL % SUBLANE_BF16 == 0
    Lp = _round_up(L, TL)
    NT = Lp // TL

    x_in = x_nlc if Lp == L else jnp.pad(x_nlc, ((0, 0), (0, Lp - L), (0, 0)))

    operands = [x_in, kp["w1"], kp["b1"], kp["w2"], kp["b2"]]
    # Weights/biases: constant index_maps -> fetched once by the pipeline.
    # TODO(synk): on v7x with very large C_out, request single-buffering of the
    # grid-invariant weight blocks (pipeline_mode=pl.Buffered(1)) to halve VMEM.
    in_specs = [
        pl.BlockSpec((1, TL, C_in_p), lambda b, j: (b, j, 0)),
        pl.BlockSpec((k * C_in_p, C_out_p), lambda b, j: (0, 0)),
        pl.BlockSpec((1, C_out_p), lambda b, j: (0, 0)),
        pl.BlockSpec((k * C_out_p, C_out_p), lambda b, j: (0, 0)),
        pl.BlockSpec((1, C_out_p), lambda b, j: (0, 0)),
    ]
    if has_downsample:  # only DMA the 1x1 downsample weights when they exist
        operands += [kp["wd"], kp["bd"]]
        in_specs += [pl.BlockSpec((C_in_p, C_out_p), lambda b, j: (0, 0)),
                     pl.BlockSpec((1, C_out_p), lambda b, j: (0, 0))]

    scratch = []
    if k > 1:
        scratch = [
            pltpu.VMEM((hr + TL, C_in_p), jnp.bfloat16),    # input tile + aligned halo
            pltpu.VMEM((hr + TL, C_out_p), jnp.bfloat16),   # conv1 act  + aligned halo
            pltpu.VMEM((TL, k * C_in_p), jnp.bfloat16),     # tap-folded conv1 LHS
            pltpu.VMEM((TL, k * C_out_p), jnp.bfloat16),    # tap-folded conv2 LHS
        ]

    kernel = functools.partial(_residual_block_kernel, k=k, dilation=dilation,
                               tl=TL, pad=pad, hr=hr, nt=NT,
                               has_downsample=has_downsample)

    flops = 2 * B * Lp * (k * C_in_p * C_out_p + k * C_out_p * C_out_p
                          + (C_in_p * C_out_p if has_downsample else 0))
    bytes_accessed = (x_in.size * 2
                      + kp["w1"].size * 2 + kp["w2"].size * 2
                      + (kp["wd"].size * 2 if has_downsample else 0)
                      + B * Lp * C_out_p * out_bytes)
    cost = pl.CostEstimate(flops=flops, transcendentals=0,
                           bytes_accessed=bytes_accessed)

    out = pl.pallas_call(
        kernel,
        out_shape=jax.ShapeDtypeStruct((B, Lp, C_out_p), out_dtype),
        grid_spec=pltpu.PrefetchScalarGridSpec(
            num_scalar_prefetch=0,
            grid=(B, NT),
            in_specs=in_specs,
            out_specs=pl.BlockSpec((1, TL, C_out_p), lambda b, j: (b, j, 0)),
            scratch_shapes=scratch,
        ),
        compiler_params=pltpu.CompilerParams(
            dimension_semantics=("parallel", "arbitrary"),
            vmem_limit_bytes=int(min(max(vmem_bytes(TL) * 5 // 4, 16 << 20), 96 << 20)),
        ),
        cost_estimate=cost,
    )(*operands)

    return out if Lp == L else out[:, :L, :]


def residual_block_forward(x_ncl, params, *, kernel_size, dilation, padding,
                           tile_l=1024):
    """PyTorch-compatible entry: x (B, C_in, L) f32 -> (B, C_out, L) f32.
    Layout conversion / channel padding happens ONCE here; a stacked TCN should
    call residual_block_forward_nlc directly and stay channels-last bf16."""
    B, C_in, L = x_ncl.shape
    kp = prepare_params(params, kernel_size=kernel_size)
    x_nlc = jnp.pad(jnp.transpose(x_ncl, (0, 2, 1)),
                    ((0, 0), (0, 0), (0, kp["c_in_p"] - C_in))).astype(jnp.bfloat16)
    out_nlc = residual_block_forward_nlc(x_nlc, kp, dilation=dilation,
                                         padding=padding, tile_l=tile_l)
    return jnp.transpose(out_nlc[:, :, :kp["c_out"]].astype(jnp.float32), (0, 2, 1))


# -------------------- parameter setup (plain JAX glue) --------------------

def _weight_norm(v, g):
    # PyTorch weight_norm with dim=0: per-output-channel 2-norm over (C_in, K).
    norm = jnp.sqrt(jnp.sum(v * v, axis=(1, 2), keepdims=True))
    return g[:, None, None] * v / norm


def make_params(key, n_inputs, n_outputs, kernel_size):
    ks = jax.random.split(key, 8)
    v1 = 0.01 * jax.random.normal(ks[0], (n_outputs, n_inputs, kernel_size), jnp.float32)
    g1 = jax.random.uniform(ks[1], (n_outputs,), jnp.float32, 0.5, 1.5)
    b1 = 0.01 * jax.random.normal(ks[2], (n_outputs,), jnp.float32)
    v2 = 0.01 * jax.random.normal(ks[3], (n_outputs, n_outputs, kernel_size), jnp.float32)
    g2 = jax.random.uniform(ks[4], (n_outputs,), jnp.float32, 0.5, 1.5)
    b2 = 0.01 * jax.random.normal(ks[5], (n_outputs,), jnp.float32)
    w1 = _weight_norm(v1, g1)
    w2 = _weight_norm(v2, g2)
    if n_inputs != n_outputs:
        wd = 0.01 * jax.random.normal(ks[6], (n_outputs, n_inputs, 1), jnp.float32)
        bd = 0.01 * jax.random.normal(ks[7], (n_outputs,), jnp.float32)
    else:
        wd, bd = None, None
    return (w1, b1, w2, b2, wd, bd)


# ---------------- pure-JAX f32 reference (for verification) ----------------

def reference_forward(x, params, *, kernel_size, dilation, padding):
    w1, b1, w2, b2, wd, bd = params

    def conv1d(inp, w, b, dil, pad):
        y = lax.conv_general_dilated(inp, w, window_strides=(1,), padding=[(pad, pad)],
                                     rhs_dilation=(dil,),
                                     dimension_numbers=("NCH", "OIH", "NCH"))
        return y + b[None, :, None]

    out = conv1d(x, w1, b1, dilation, padding)
    out = out[:, :, :-padding]                     # Chomp1d
    out = jnp.maximum(out, 0.0)                    # ReLU (dropout = identity)
    out = conv1d(out, w2, b2, dilation, padding)
    out = out[:, :, :-padding]
    out = jnp.maximum(out, 0.0)
    res = x if wd is None else conv1d(x, wd, bd, 1, 0)
    return jnp.maximum(out + res, 0.0)


if __name__ == "__main__":
    key = jax.random.PRNGKey(0)

    # config 1: channel change (downsample path), single L-tile
    # config 2: identity residual, L split into 2 tiles -> exercises the halo carry
    # config 3: deeper dilation (pad=8), 4 tiles -> misaligned tap reads + carry
    configs = [
        dict(B=2, C_in=4, C_out=8, L=16, k=3, d=2, tile_l=512),
        dict(B=2, C_in=8, C_out=8, L=32, k=3, d=2, tile_l=16),
        dict(B=2, C_in=8, C_out=8, L=64, k=3, d=4, tile_l=16),
    ]

    for cfg in configs:
        B, C_in, C_out, L = cfg["B"], cfg["C_in"], cfg["C_out"], cfg["L"]
        k, d = cfg["k"], cfg["d"]
        pad = (k - 1) * d                           # causal TCN padding

        kx, kp_, key = jax.random.split(key, 3)
        x = jax.random.normal(kx, (B, C_in, L), jnp.float32)
        params = make_params(kp_, C_in, C_out, k)

        out = jax.block_until_ready(
            residual_block_forward(x, params, kernel_size=k, dilation=d,
                                   padding=pad, tile_l=cfg["tile_l"]))
        ref = jax.block_until_ready(
            reference_forward(x, params, kernel_size=k, dilation=d, padding=pad))

        assert out.shape == (B, C_out, L), out.shape
        # bf16 matmul operands, bf16 residual read and bf16 output vs f32 ref.
        assert jnp.allclose(out, ref, rtol=2e-2, atol=2.5e-2), \
            f"max err {float(jnp.max(jnp.abs(out - ref)))} for cfg {cfg}"

    # Stacked-TCN usage: two blocks chained channels-last in bf16 -- layout
    # conversion & channel padding happen exactly once, not per block.
    B, L, k = 2, 64, 3
    kx, k1, k2, key = jax.random.split(key, 4)
    x = jax.random.normal(kx, (B, 4, L), jnp.float32)
    p1 = make_params(k1, 4, 8, k)                   # 4 -> 8 (downsample path)
    p2 = make_params(k2, 8, 8, k)                   # 8 -> 8 (identity residual)
    kpar1 = prepare_params(p1, kernel_size=k)
    kpar2 = prepare_params(p2, kernel_size=k)

    x_nlc = jnp.pad(jnp.transpose(x, (0, 2, 1)),
                    ((0, 0), (0, 0), (0, kpar1["c_in_p"] - 4))).astype(jnp.bfloat16)
    h1 = residual_block_forward_nlc(x_nlc, kpar1, dilation=1, padding=2, tile_l=32)
    h2 = residual_block_forward_nlc(h1, kpar2, dilation=2, padding=4, tile_l=32)
    out2 = jax.block_until_ready(
        jnp.transpose(h2[:, :, :8].astype(jnp.float32), (0, 2, 1)))

    ref2 = reference_forward(
        reference_forward(x, p1, kernel_size=k, dilation=1, padding=2),
        p2, kernel_size=k, dilation=2, padding=4)
    assert out2.shape == (B, 8, L)
    assert jnp.allclose(out2, ref2, rtol=3e-2, atol=3e-2), \
        f"stacked max err {float(jnp.max(jnp.abs(out2 - ref2)))}"

    print("KERNEL_OK")
</pallas_src>

<mosaic_0001>
module attributes {stable_mosaic.version = 11 : i64} {
  func.func @_residual_block_kernel(%arg0: i32, %arg1: i32, %arg2: memref<1x16x128xbf16, #tpu.memory_space<vmem>>, %arg3: memref<384x128xbf16, #tpu.memory_space<vmem>>, %arg4: memref<1x128xf32, #tpu.memory_space<vmem>>, %arg5: memref<384x128xbf16, #tpu.memory_space<vmem>>, %arg6: memref<1x128xf32, #tpu.memory_space<vmem>>, %arg7: memref<128x128xbf16, #tpu.memory_space<vmem>>, %arg8: memref<1x128xf32, #tpu.memory_space<vmem>>, %arg9: memref<1x16x128xbf16, #tpu.memory_space<vmem>>, %arg10: memref<32x128xbf16, #tpu.memory_space<vmem>>, %arg11: memref<32x128xbf16, #tpu.memory_space<vmem>>, %arg12: memref<16x384xbf16, #tpu.memory_space<vmem>>, %arg13: memref<16x384xbf16, #tpu.memory_space<vmem>>) attributes {dimension_semantics = [#tpu.dimension_semantics<parallel>, #tpu.dimension_semantics<arbitrary>], iteration_bounds = array<i64: 2, 1>, scalar_prefetch = 0 : i64, scratch_operands = 4 : i64, tpu.core_type = #tpu.core_type<tc>, window_params = [{transform_indices = @transform_0, window_bounds = array<i64: 1, 16, 128>}, {pipeline_mode = #tpu.pipeline_mode<synchronous>, transform_indices = @transform_1, window_bounds = array<i64: 384, 128>}, {pipeline_mode = #tpu.pipeline_mode<synchronous>, transform_indices = @transform_2, window_bounds = array<i64: 1, 128>}, {pipeline_mode = #tpu.pipeline_mode<synchronous>, transform_indices = @transform_3, window_bounds = array<i64: 384, 128>}, {pipeline_mode = #tpu.pipeline_mode<synchronous>, transform_indices = @transform_4, window_bounds = array<i64: 1, 128>}, {pipeline_mode = #tpu.pipeline_mode<synchronous>, transform_indices = @transform_5, window_bounds = array<i64: 128, 128>}, {pipeline_mode = #tpu.pipeline_mode<synchronous>, transform_indices = @transform_6, window_bounds = array<i64: 1, 128>}, {transform_indices = @transform_7, window_bounds = array<i64: 1, 16, 128>}]} {
    %c0 = arith.constant 0 : index
    %c0_0 = arith.constant 0 : index
    %c0_1 = arith.constant 0 : index
    %0 = vector.load %arg2[%c0, %c0_0, %c0_1] : memref<1x16x128xbf16, #tpu.memory_space<vmem>>, vector<1x16x128xbf16>
    %1 = vector.shape_cast %0 : vector<1x16x128xbf16> to vector<16x128xbf16>
    %c0_i32 = arith.constant 0 : i32
    %2 = arith.cmpi eq, %arg1, %c0_i32 : i32
    %3 = arith.extui %2 : i1 to i32
    %c0_i32_2 = arith.constant 0 : i32
    %4 = arith.cmpi ne, %3, %c0_i32_2 : i32
    scf.if %4 {
      %cst_46 = arith.constant 0.000000e+00 : bf16
      %46 = vector.broadcast %cst_46 : bf16 to vector<16x128xbf16>
      %c0_47 = arith.constant 0 : index
      %c0_48 = arith.constant 0 : index
      %47 = vector.load %arg10[%c0_47, %c0_48] : memref<32x128xbf16, #tpu.memory_space<vmem>>, vector<16x128xbf16>
      tpu.vector_store %arg10[%c0_47, %c0_48], %46 {strides = array<i32>} : memref<32x128xbf16, #tpu.memory_space<vmem>>, vector<16x128xbf16>,
      %cst_49 = arith.constant 0.000000e+00 : bf16
      %48 = vector.broadcast %cst_49 : bf16 to vector<16x128xbf16>
      %c0_50 = arith.constant 0 : index
      %c0_51 = arith.constant 0 : index
      %49 = vector.load %arg11[%c0_50, %c0_51] : memref<32x128xbf16, #tpu.memory_space<vmem>>, vector<16x128xbf16>
      tpu.vector_store %arg11[%c0_50, %c0_51], %48 {strides = array<i32>} : memref<32x128xbf16, #tpu.memory_space<vmem>>, vector<16x128xbf16>,
    } else {
    }
    %c16 = arith.constant 16 : index
    %c0_3 = arith.constant 0 : index
    %5 = vector.load %arg10[%c16, %c0_3] : memref<32x128xbf16, #tpu.memory_space<vmem>>, vector<16x128xbf16>
    tpu.vector_store %arg10[%c16, %c0_3], %1 {strides = array<i32>} : memref<32x128xbf16, #tpu.memory_space<vmem>>, vector<16x128xbf16>,
    %c0_4 = arith.constant 0 : index
    %c256 = arith.constant 256 : index
    %6 = vector.load %arg12[%c0_4, %c256] : memref<16x384xbf16, #tpu.memory_space<vmem>>, vector<16x128xbf16>
    tpu.vector_store %arg12[%c0_4, %c256], %1 {strides = array<i32>} : memref<16x384xbf16, #tpu.memory_space<vmem>>, vector<16x128xbf16>,
    %c12 = arith.constant 12 : index
    %c0_5 = arith.constant 0 : index
    %7 = vector.load %arg10[%c12, %c0_5] : memref<32x128xbf16, #tpu.memory_space<vmem>>, vector<16x128xbf16>
    %c0_6 = arith.constant 0 : index
    %c0_7 = arith.constant 0 : index
    %8 = vector.load %arg12[%c0_6, %c0_7] : memref<16x384xbf16, #tpu.memory_space<vmem>>, vector<16x128xbf16>
    tpu.vector_store %arg12[%c0_6, %c0_7], %7 {strides = array<i32>} : memref<16x384xbf16, #tpu.memory_space<vmem>>, vector<16x128xbf16>,
    %c14 = arith.constant 14 : index
    %c0_8 = arith.constant 0 : index
    %9 = vector.load %arg10[%c14, %c0_8] : memref<32x128xbf16, #tpu.memory_space<vmem>>, vector<16x128xbf16>
    %c0_9 = arith.constant 0 : index
    %c128 = arith.constant 128 : index
    %10 = vector.load %arg12[%c0_9, %c128] : memref<16x384xbf16, #tpu.memory_space<vmem>>, vector<16x128xbf16>
    tpu.vector_store %arg12[%c0_9, %c128], %9 {strides = array<i32>} : memref<16x384xbf16, #tpu.memory_space<vmem>>, vector<16x128xbf16>,
    %c0_10 = arith.constant 0 : index
    %c0_11 = arith.constant 0 : index
    %11 = vector.load %arg12[%c0_10, %c0_11] : memref<16x384xbf16, #tpu.memory_space<vmem>>, vector<16x384xbf16>
    %c0_12 = arith.constant 0 : index
    %c0_13 = arith.constant 0 : index
    %12 = vector.load %arg3[%c0_12, %c0_13] : memref<384x128xbf16, #tpu.memory_space<vmem>>, vector<384x128xbf16>
    %cst = arith.constant dense<0.000000e+00> : vector<16x128xf32>
    %13 = tpu.matmul %11, %12, %cst {dimension_numbers = #tpu.dot_dimension_numbers<[1], [0], [0], [1], [0, 0, 1, 1], [], []>} : vector<16x384xbf16>, vector<384x128xbf16>, vector<16x128xf32> -> vector<16x128xf32>
    %c0_14 = arith.constant 0 : index
    %c0_15 = arith.constant 0 : index
    %14 = vector.load %arg4[%c0_14, %c0_15] : memref<1x128xf32, #tpu.memory_space<vmem>>, vector<1x128xf32>
    %15 = vector.broadcast %14 : vector<1x128xf32> to vector<16x128xf32>
    %16 = arith.addf %13, %15 : vector<16x128xf32>
    %cst_16 = arith.constant 0.000000e+00 : f32
    %17 = vector.broadcast %cst_16 : f32 to vector<16x128xf32>
    %18 = arith.maximumf %16, %17 : vector<16x128xf32>
    %19 = arith.truncf %18 : vector<16x128xf32> to vector<16x128xbf16>
    %c16_17 = arith.constant 16 : index
    %c0_18 = arith.constant 0 : index
    %20 = vector.load %arg11[%c16_17, %c0_18] : memref<32x128xbf16, #tpu.memory_space<vmem>>, vector<16x128xbf16>
    tpu.vector_store %arg11[%c16_17, %c0_18], %19 {strides = array<i32>} : memref<32x128xbf16, #tpu.memory_space<vmem>>, vector<16x128xbf16>,
    %c0_19 = arith.constant 0 : index
    %c256_20 = arith.constant 256 : index
    %21 = vector.load %arg13[%c0_19, %c256_20] : memref<16x384xbf16, #tpu.memory_space<vmem>>, vector<16x128xbf16>
    tpu.vector_store %arg13[%c0_19, %c256_20], %19 {strides = array<i32>} : memref<16x384xbf16, #tpu.memory_space<vmem>>, vector<16x128xbf16>,
    %c12_21 = arith.constant 12 : index
    %c0_22 = arith.constant 0 : index
    %22 = vector.load %arg11[%c12_21, %c0_22] : memref<32x128xbf16, #tpu.memory_space<vmem>>, vector<16x128xbf16>
    %c0_23 = arith.constant 0 : index
    %c0_24 = arith.constant 0 : index
    %23 = vector.load %arg13[%c0_23, %c0_24] : memref<16x384xbf16, #tpu.memory_space<vmem>>, vector<16x128xbf16>
    tpu.vector_store %arg13[%c0_23, %c0_24], %22 {strides = array<i32>} : memref<16x384xbf16, #tpu.memory_space<vmem>>, vector<16x128xbf16>,
    %c14_25 = arith.constant 14 : index
    %c0_26 = arith.constant 0 : index
    %24 = vector.load %arg11[%c14_25, %c0_26] : memref<32x128xbf16, #tpu.memory_space<vmem>>, vector<16x128xbf16>
    %c0_27 = arith.constant 0 : index
    %c128_28 = arith.constant 128 : index
    %25 = vector.load %arg13[%c0_27, %c128_28] : memref<16x384xbf16, #tpu.memory_space<vmem>>, vector<16x128xbf16>
    tpu.vector_store %arg13[%c0_27, %c128_28], %24 {strides = array<i32>} : memref<16x384xbf16, #tpu.memory_space<vmem>>, vector<16x128xbf16>,
    %c0_29 = arith.constant 0 : index
    %c0_30 = arith.constant 0 : index
    %26 = vector.load %arg13[%c0_29, %c0_30] : memref<16x384xbf16, #tpu.memory_space<vmem>>, vector<16x384xbf16>
    %c0_31 = arith.constant 0 : index
    %c0_32 = arith.constant 0 : index
    %27 = vector.load %arg5[%c0_31, %c0_32] : memref<384x128xbf16, #tpu.memory_space<vmem>>, vector<384x128xbf16>
    %cst_33 = arith.constant dense<0.000000e+00> : vector<16x128xf32>
    %28 = tpu.matmul %26, %27, %cst_33 {dimension_numbers = #tpu.dot_dimension_numbers<[1], [0], [0], [1], [0, 0, 1, 1], [], []>} : vector<16x384xbf16>, vector<384x128xbf16>, vector<16x128xf32> -> vector<16x128xf32>
    %c0_34 = arith.constant 0 : index
    %c0_35 = arith.constant 0 : index
    %29 = vector.load %arg6[%c0_34, %c0_35] : memref<1x128xf32, #tpu.memory_space<vmem>>, vector<1x128xf32>
    %30 = vector.broadcast %29 : vector<1x128xf32> to vector<16x128xf32>
    %31 = arith.addf %28, %30 : vector<16x128xf32>
    %cst_36 = arith.constant 0.000000e+00 : f32
    %32 = vector.broadcast %cst_36 : f32 to vector<16x128xf32>
    %33 = arith.maximumf %31, %32 : vector<16x128xf32>
    %c0_37 = arith.constant 0 : index
    %c0_38 = arith.constant 0 : index
    %34 = vector.load %arg7[%c0_37, %c0_38] : memref<128x128xbf16, #tpu.memory_space<vmem>>, vector<128x128xbf16>
    %cst_39 = arith.constant dense<0.000000e+00> : vector<16x128xf32>
    %35 = tpu.matmul %1, %34, %cst_39 {dimension_numbers = #tpu.dot_dimension_numbers<[1], [0], [0], [1], [0, 0, 1, 1], [], []>} : vector<16x128xbf16>, vector<128x128xbf16>, vector<16x128xf32> -> vector<16x128xf32>
    %c0_40 = arith.constant 0 : index
    %c0_41 = arith.constant 0 : index
    %36 = vector.load %arg8[%c0_40, %c0_41] : memref<1x128xf32, #tpu.memory_space<vmem>>, vector<1x128xf32>
    %37 = vector.broadcast %36 : vector<1x128xf32> to vector<16x128xf32>
    %38 = arith.addf %35, %37 : vector<16x128xf32>
    %39 = arith.addf %33, %38 : vector<16x128xf32>
    %cst_42 = arith.constant 0.000000e+00 : f32
    %40 = vector.broadcast %cst_42 : f32 to vector<16x128xf32>
    %41 = arith.maximumf %39, %40 : vector<16x128xf32>
    %42 = arith.truncf %41 : vector<16x128xf32> to vector<16x128xbf16>
    %c0_43 = arith.constant 0 : index
    %c0_44 = arith.constant 0 : index
    %c0_45 = arith.constant 0 : index
    %43 = vector.load %arg9[%c0_43, %c0_44, %c0_45] : memref<1x16x128xbf16, #tpu.memory_space<vmem>>, vector<1x16x128xbf16>
    %44 = vector.shape_cast %43 : vector<1x16x128xbf16> to vector<16x128xbf16>
    %45 = vector.shape_cast %42 : vector<16x128xbf16> to vector<1x16x128xbf16>
    tpu.vector_store %arg9[%c0_43, %c0_44, %c0_45], %45 {strides = array<i32>} : memref<1x16x128xbf16, #tpu.memory_space<vmem>>, vector<1x16x128xbf16>,
    return
  }
  func.func @transform_0(%arg0: i32, %arg1: i32) -> (i32, i32, i32) {
    %c0_i32 = arith.constant 0 : i32
    %c0_i32_0 = arith.constant 0 : i32
    return %arg0, %arg1, %c0_i32 : i32, i32, i32
  }
  func.func @transform_1(%arg0: i32, %arg1: i32) -> (i32, i32) {
    %c0_i32 = arith.constant 0 : i32
    %c0_i32_0 = arith.constant 0 : i32
    %c0_i32_1 = arith.constant 0 : i32
    return %c0_i32, %c0_i32_0 : i32, i32
  }
  func.func @transform_2(%arg0: i32, %arg1: i32) -> (i32, i32) {
    %c0_i32 = arith.constant 0 : i32
    %c0_i32_0 = arith.constant 0 : i32
    %c0_i32_1 = arith.constant 0 : i32
    return %c0_i32, %c0_i32_0 : i32, i32
  }
  func.func @transform_3(%arg0: i32, %arg1: i32) -> (i32, i32) {
    %c0_i32 = arith.constant 0 : i32
    %c0_i32_0 = arith.constant 0 : i32
    %c0_i32_1 = arith.constant 0 : i32
    return %c0_i32, %c0_i32_0 : i32, i32
  }
  func.func @transform_4(%arg0: i32, %arg1: i32) -> (i32, i32) {
    %c0_i32 = arith.constant 0 : i32
    %c0_i32_0 = arith.constant 0 : i32
    %c0_i32_1 = arith.constant 0 : i32
    return %c0_i32, %c0_i32_0 : i32, i32
  }
  func.func @transform_5(%arg0: i32, %arg1: i32) -> (i32, i32) {
    %c0_i32 = arith.constant 0 : i32
    %c0_i32_0 = arith.constant 0 : i32
    %c0_i32_1 = arith.constant 0 : i32
    return %c0_i32, %c0_i32_0 : i32, i32
  }
  func.func @transform_6(%arg0: i32, %arg1: i32) -> (i32, i32) {
    %c0_i32 = arith.constant 0 : i32
    %c0_i32_0 = arith.constant 0 : i32
    %c0_i32_1 = arith.constant 0 : i32
    return %c0_i32, %c0_i32_0 : i32, i32
  }
  func.func @transform_7(%arg0: i32, %arg1: i32) -> (i32, i32, i32) {
    %c0_i32 = arith.constant 0 : i32
    %c0_i32_0 = arith.constant 0 : i32
    return %arg0, %arg1, %c0_i32 : i32, i32, i32
  }
}

</mosaic_0001>

<llo_original>
// kernel: tpu_custom_call.1
$region0: #{tpu_custom_call.1}
  #allocation0 [shape = 'u32[]', space=smem, size = 0x4, offset = 0x4, fixed_abs, tag = 'smem constant byte address 0x4 - core index']
  #allocation1 [shape = 'u32[144,128]{1,0:T(1,128)}', space=vmem, size = 0x12000, scoped, tag = 'internal scratch']
  #allocation2 [shape = 'bf16[32,128]{1,0:T(8,128)(2,1)}', space=vmem, size = 0x2000, scoped, tag = 'scratch operand']
  #allocation3 [shape = 'bf16[32,128]{1,0:T(8,128)(2,1)}', space=vmem, size = 0x2000, scoped, tag = 'scratch operand']
  #allocation4 [shape = 'bf16[16,384]{1,0:T(8,128)(2,1)}', space=vmem, size = 0x3000, scoped, tag = 'scratch operand']
  #allocation5 [shape = 'bf16[16,384]{1,0:T(8,128)(2,1)}', space=vmem, size = 0x3000, scoped, tag = 'scratch operand']
  %s0 = inlined_call_operand.hbm [shape: bf16[2,16,128], index: 0, kind: input, shape index: {}]
  %s1 = inlined_call_operand.hbm [shape: bf16[384,128], index: 1, kind: input, shape index: {}]
  %s2 = inlined_call_operand.vmem [shape: f32[1,128], index: 2, kind: input, shape index: {}]
  %s3 = inlined_call_operand.hbm [shape: bf16[384,128], index: 3, kind: input, shape index: {}]
  %s4 = inlined_call_operand.vmem [shape: f32[1,128], index: 4, kind: input, shape index: {}]
  %s5 = inlined_call_operand.hbm [shape: bf16[128,128], index: 5, kind: input, shape index: {}]
  %s6 = inlined_call_operand.vmem [shape: f32[1,128], index: 6, kind: input, shape index: {}]
  %s7 = inlined_call_operand.hbm [shape: bf16[2,16,128], index: 7, kind: output, shape index: {}]
  %s8 = sld [smem:[#allocation0]]
  $region81: #{tpu_custom_call.1} parent=0
    _
  %s10 = ssub.s32 1, %s8
  %s11 = scalar_select 0, %s10, %s8
  $region1: #{tpu_custom_call.1} parent=0
    #allocation6 [shape = 'u8[8192]{0}', space=vmem, size = 0x2000, scoped, tag = 'input window, operand 0']
    #allocation7 [shape = 's32[2]{0}', space=sflag, size = 0x8, scoped, tag = 'scoped memory for tpu_custom_call.1']
    #allocation8 [shape = 's32[2]{0}', space=sflag, size = 0x8, scoped, tag = 'scoped memory for tpu_custom_call.1']
    #allocation9 [shape = 'u8[98304]{0}', space=vmem, size = 0x18000, scoped, tag = 'input window, operand 1, single buffered']
    #allocation10 [shape = 's32[1]{0}', space=sflag, size = 0x4, scoped, tag = 'scoped memory for tpu_custom_call.1']
    #allocation11 [shape = 'u8[98304]{0}', space=vmem, size = 0x18000, scoped, tag = 'input window, operand 3, single buffered']
    #allocation12 [shape = 'u8[32768]{0}', space=vmem, size = 0x8000, scoped, tag = 'input window, operand 5, single buffered']
    #allocation13 [shape = 's32[1]{0}', space=sflag, size = 0x4, scoped, tag = 'scoped memory for tpu_custom_call.1']
    #allocation14 [shape = 'u8[8192]{0}', space=vmem, size = 0x2000, scoped, tag = 'output window, operand 0']
    %12 = vsyncpa [#allocation7], 0
    %s13 = scalar_lea.sflag [#allocation7], 1
    %14 = vsyncpa %s13, 0
    %15 = vsyncpa [#allocation10], 0
    %16 = vsyncpa [#allocation13], 0
    %17 = vsyncpa [#allocation8], 0
    %s18 = scalar_lea.sflag [#allocation8], 1
    %19 = vsyncpa %s18, 0
    loop: start=0, step=1, limit=4
    $region2: #{tpu_custom_call.1} parent=1 // loop_pre_header
      _
    $region3: #{tpu_custom_call.1} parent=1 // loop_header
      %s21 = sphi 0, %s25
      %p22 = scmp.ge.s32.totalorder %s21, 4
      %s28 = sphi 0, %s40
      %s29 = sphi 0, %s36
      %s30 = sphi 0, %s28
      %s31 = sphi 0, %s29
      %s32 = sphi 0, %s30
      %s33 = sphi 0, %s31
      %s45 = sphi 0, %s47
      %s48 = sphi 0, %s45
      %s49 = sphi 0, %s48
      %s65 = sphi 0, %s49
      %s69 = sphi 0, %s69
      %s71 = sphi 0, %s69
      %s72 = sphi 0, %s71
      %s86 = sphi 0, %s72
      %s90 = sphi 0, %s90
      %s92 = sphi 0, %s90
      %s93 = sphi 0, %s92
      %s107 = sphi 0, %s93
      %s111 = sphi 0, %s111
      %s113 = sphi 0, %s111
      %s114 = sphi 0, %s113
      %s128 = sphi 0, %s114
      %s132 = sphi 0, %s132
      %s134 = sphi 0, %s132
      %s135 = sphi 0, %s134
      %s149 = sphi 0, %s135
      %s153 = sphi 0, %s153
      %s155 = sphi 0, %s153
      %s156 = sphi 0, %s155
      %s170 = sphi 0, %s156
      %s174 = sphi 0, %s174
      %s176 = sphi 0, %s174
      %s177 = sphi 0, %s176
      %s191 = sphi 0, %s177
      %s199 = sphi 0, %s201
      %s202 = sphi 0, %s199
      %s203 = sphi 0, %s202
      %s219 = sphi 0, %s203
    $region4: #{tpu_custom_call.1} parent=1 // loop_header_branch
      %24 = sbr.rel (%p22) target = $region8
    $region5: #{tpu_custom_call.1} parent=1 // loop_body
      %s26 = ssub.s32 %s21, 1
      %s27 = ssub.s32 %s21, 2
      %s34 = sadd.s32 1, %s29
      %p35 = scmp.ge.s32.totalorder %s34, 1
      %s36 = scalar_select %p35, 0, %s34
      %s37 = sadd.s32 1, %s28
      %s38 = scalar_select %p35, %s37, %s28
      %p39 = scmp.ge.s32.totalorder %s38, 2
      %s40 = scalar_select %p39, 0, %s38
      %s41 = ssub.s32 %s28, %s40
      %s42 = ssub.s32 %s29, %s36
      %s43 = sor.u32 %s41, %s42
      %p44 = scmp.eq.s32.totalorder %s43, 0
      %s46 = sadd.s32 %s45, 1
      %s47 = scalar_select %p44, %s45, %s46
      %p50 = pneg %p44
      %p51 = scmp.eq.s32.totalorder %s21, 1
      %p52 = por %p50, %p51
      %p53 = scmp.ne.s32.totalorder %s45, %s48
      %p54 = scmp.eq.s32.totalorder %s21, 0
      %p55 = por %p53, %p54
      %p56 = scmp.ne.s32.totalorder %s45, %s48
      %p57 = scmp.eq.s32.totalorder %s26, 1
      %p58 = por %p56, %p57
      %p59 = scmp.ne.s32.totalorder %s48, %s49
      %p60 = scmp.eq.s32.totalorder %s26, 0
      %p61 = por %p59, %p60
      %p62 = scmp.ne.s32.totalorder %s48, %s49
      %p63 = scmp.eq.s32.totalorder %s27, 1
      %p64 = por %p62, %p63
      %p66 = scmp.ne.s32.totalorder %s49, %s65
      %p67 = scmp.eq.s32.totalorder %s27, 0
      %p68 = por %p66, %p67
      %s70 = sadd.s32 %s69, 1
      %p73 = scmp.eq.s32.totalorder %s21, 1
      %p74 = scmp.ne.s32.totalorder %s69, %s71
      %p75 = scmp.eq.s32.totalorder %s21, 0
      %p76 = por %p74, %p75
      %p77 = scmp.ne.s32.totalorder %s69, %s71
      %p78 = scmp.eq.s32.totalorder %s26, 1
      %p79 = por %p77, %p78
      %p80 = scmp.ne.s32.totalorder %s71, %s72
      %p81 = scmp.eq.s32.totalorder %s26, 0
      %p82 = por %p80, %p81
      %p83 = scmp.ne.s32.totalorder %s71, %s72
      %p84 = scmp.eq.s32.totalorder %s27, 1
      %p85 = por %p83, %p84
      %p87 = scmp.ne.s32.totalorder %s72, %s86
      %p88 = scmp.eq.s32.totalorder %s27, 0
      %p89 = por %p87, %p88
      %s91 = sadd.s32 %s90, 1
      %p94 = scmp.eq.s32.totalorder %s21, 1
      %p95 = scmp.ne.s32.totalorder %s90, %s92
      %p96 = scmp.eq.s32.totalorder %s21, 0
      %p97 = por %p95, %p96
      %p98 = scmp.ne.s32.totalorder %s90, %s92
      %p99 = scmp.eq.s32.totalorder %s26, 1
      %p100 = por %p98, %p99
      %p101 = scmp.ne.s32.totalorder %s92, %s93
      %p102 = scmp.eq.s32.totalorder %s26, 0
      %p103 = por %p101, %p102
      %p104 = scmp.ne.s32.totalorder %s92, %s93
      %p105 = scmp.eq.s32.totalorder %s27, 1
      %p106 = por %p104, %p105
      %p108 = scmp.ne.s32.totalorder %s93, %s107
      %p109 = scmp.eq.s32.totalorder %s27, 0
      %p110 = por %p108, %p109
      %s112 = sadd.s32 %s111, 1
      %p115 = scmp.eq.s32.totalorder %s21, 1
      %p116 = scmp.ne.s32.totalorder %s111, %s113
      %p117 = scmp.eq.s32.totalorder %s21, 0
      %p118 = por %p116, %p117
      %p119 = scmp.ne.s32.totalorder %s111, %s113
      %p120 = scmp.eq.s32.totalorder %s26, 1
      %p121 = por %p119, %p120
      %p122 = scmp.ne.s32.totalorder %s113, %s114
      %p123 = scmp.eq.s32.totalorder %s26, 0
      %p124 = por %p122, %p123
      %p125 = scmp.ne.s32.totalorder %s113, %s114
      %p126 = scmp.eq.s32.totalorder %s27, 1
      %p127 = por %p125, %p126
      %p129 = scmp.ne.s32.totalorder %s114, %s128
      %p130 = scmp.eq.s32.totalorder %s27, 0
      %p131 = por %p129, %p130
      %s133 = sadd.s32 %s132, 1
      %p136 = scmp.eq.s32.totalorder %s21, 1
      %p137 = scmp.ne.s32.totalorder %s132, %s134
      %p138 = scmp.eq.s32.totalorder %s21, 0
      %p139 = por %p137, %p138
      %p140 = scmp.ne.s32.totalorder %s132, %s134
      %p141 = scmp.eq.s32.totalorder %s26, 1
      %p142 = por %p140, %p141
      %p143 = scmp.ne.s32.totalorder %s134, %s135
      %p144 = scmp.eq.s32.totalorder %s26, 0
      %p145 = por %p143, %p144
      %p146 = scmp.ne.s32.totalorder %s134, %s135
      %p147 = scmp.eq.s32.totalorder %s27, 1
      %p148 = por %p146, %p147
      %p150 = scmp.ne.s32.totalorder %s135, %s149
      %p151 = scmp.eq.s32.totalorder %s27, 0
      %p152 = por %p150, %p151
      %s154 = sadd.s32 %s153, 1
      %p157 = scmp.eq.s32.totalorder %s21, 1
      %p158 = scmp.ne.s32.totalorder %s153, %s155
      %p159 = scmp.eq.s32.totalorder %s21, 0
      %p160 = por %p158, %p159
      %p161 = scmp.ne.s32.totalorder %s153, %s155
      %p162 = scmp.eq.s32.totalorder %s26, 1
      %p163 = por %p161, %p162
      %p164 = scmp.ne.s32.totalorder %s155, %s156
      %p165 = scmp.eq.s32.totalorder %s26, 0
      %p166 = por %p164, %p165
      %p167 = scmp.ne.s32.totalorder %s155, %s156
      %p168 = scmp.eq.s32.totalorder %s27, 1
      %p169 = por %p167, %p168
      %p171 = scmp.ne.s32.totalorder %s156, %s170
      %p172 = scmp.eq.s32.totalorder %s27, 0
      %p173 = por %p171, %p172
      %s175 = sadd.s32 %s174, 1
      %p178 = scmp.eq.s32.totalorder %s21, 1
      %p179 = scmp.ne.s32.totalorder %s174, %s176
      %p180 = scmp.eq.s32.totalorder %s21, 0
      %p181 = por %p179, %p180
      %p182 = scmp.ne.s32.totalorder %s174, %s176
      %p183 = scmp.eq.s32.totalorder %s26, 1
      %p184 = por %p182, %p183
      %p185 = scmp.ne.s32.totalorder %s176, %s177
      %p186 = scmp.eq.s32.totalorder %s26, 0
      %p187 = por %p185, %p186
      %p188 = scmp.ne.s32.totalorder %s176, %s177
      %p189 = scmp.eq.s32.totalorder %s27, 1
      %p190 = por %p188, %p189
      %p192 = scmp.ne.s32.totalorder %s177, %s191
      %p193 = scmp.eq.s32.totalorder %s27, 0
      %p194 = por %p192, %p193
      %s195 = ssub.s32 %s28, %s40
      %s196 = ssub.s32 %s29, %s36
      %s197 = sor.u32 %s195, %s196
      %p198 = scmp.eq.s32.totalorder %s197, 0
      %s200 = sadd.s32 %s199, 1
      %s201 = scalar_select %p198, %s199, %s200
      %p204 = pneg %p198
      %p205 = scmp.eq.s32.totalorder %s21, 1
      %p206 = por %p204, %p205
      %p207 = scmp.ne.s32.totalorder %s199, %s202
      %p208 = scmp.eq.s32.totalorder %s21, 0
      %p209 = por %p207, %p208
      %p210 = scmp.ne.s32.totalorder %s199, %s202
      %p211 = scmp.eq.s32.totalorder %s26, 1
      %p212 = por %p210, %p211
      %p213 = scmp.ne.s32.totalorder %s202, %s203
      %p214 = scmp.eq.s32.totalorder %s26, 0
      %p215 = por %p213, %p214
      %p216 = scmp.ne.s32.totalorder %s202, %s203
      %p217 = scmp.eq.s32.totalorder %s27, 1
      %p218 = por %p216, %p217
      %p220 = scmp.ne.s32.totalorder %s203, %s219
      %p221 = scmp.eq.s32.totalorder %s27, 0
      %p222 = por %p220, %p221
      %p223 = scmp.le.s32.totalorder 1, %s21
      %p224 = scmp.lt.s32.totalorder %s21, 3
      %p225 = pnand %p223, %p224
      %p226 = pneg %p225
      // Predicated region
      $region9: #{tpu_custom_call.1} parent=5 // pred_check
        _
      $region10: #{tpu_custom_call.1} parent=5 // pred_check_branch
        %228 = sbr.rel (%p225) target = $region12
      $region11: #{tpu_custom_call.1} parent=5 // pred_region
        %s229 = ssub.s32 %s21, 1
        // Predicated region
        $region13: #{tpu_custom_call.1} parent=11 // pred_check
          %p230 = pneg %p82
        $region14: #{tpu_custom_call.1} parent=11 // pred_check_branch
          %232 = sbr.rel (%p230) target = $region16
        $region15: #{tpu_custom_call.1} parent=11 // pred_region
          %s234 = ssub.s32 3072, 3072
          %235 = vsyncadd [#allocation10], %s234
          %s236 = sshll.u32 [#allocation9], 4
          %s237 = int_to_ptr.vmem [resolvable:$true] %s236
          %242 = dma.hbm_to_vmem [thread:$0]  %s1, 3072, %s237, [#allocation10], 64, 64, 4
        $region16: #{tpu_custom_call.1} parent=11 // pred_fallthru
          _
        // Predicated region
        $region17: #{tpu_custom_call.1} parent=11 // pred_check
          %p243 = pneg %p103
        $region18: #{tpu_custom_call.1} parent=11 // pred_check_branch
          %245 = sbr.rel (%p243) target = $region20
        $region19: #{tpu_custom_call.1} parent=11 // pred_region
          _
        $region20: #{tpu_custom_call.1} parent=11 // pred_fallthru
          _
        // Predicated region
        $region21: #{tpu_custom_call.1} parent=11 // pred_check
          %p246 = pneg %p124
        $region22: #{tpu_custom_call.1} parent=11 // pred_check_branch
          %248 = sbr.rel (%p246) target = $region24
        $region23: #{tpu_custom_call.1} parent=11 // pred_region
          %s250 = ssub.s32 3072, 3072
          %251 = vsyncadd [#allocation10], %s250
          %s252 = sshll.u32 [#allocation11], 4
          %s253 = int_to_ptr.vmem [resolvable:$true] %s252
          %258 = dma.hbm_to_vmem [thread:$0]  %s3, 3072, %s253, [#allocation10], 64, 64, 4
        $region24: #{tpu_custom_call.1} parent=11 // pred_fallthru
          _
        // Predicated region
        $region25: #{tpu_custom_call.1} parent=11 // pred_check
          %p259 = pneg %p145
        $region26: #{tpu_custom_call.1} parent=11 // pred_check_branch
          %261 = sbr.rel (%p259) target = $region28
        $region27: #{tpu_custom_call.1} parent=11 // pred_region
          _
        $region28: #{tpu_custom_call.1} parent=11 // pred_fallthru
          _
        // Predicated region
        $region29: #{tpu_custom_call.1} parent=11 // pred_check
          %p262 = pneg %p166
        $region30: #{tpu_custom_call.1} parent=11 // pred_check_branch
          %264 = sbr.rel (%p262) target = $region32
        $region31: #{tpu_custom_call.1} parent=11 // pred_region
          %s266 = ssub.s32 1024, 1024
          %267 = vsyncadd [#allocation13], %s266
          %s268 = sshll.u32 [#allocation12], 4
          %s269 = int_to_ptr.vmem [resolvable:$true] %s268
          %274 = dma.hbm_to_vmem [thread:$0]  %s5, 1024, %s269, [#allocation13], 64, 64, 4
        $region32: #{tpu_custom_call.1} parent=11 // pred_fallthru
          _
        // Predicated region
        $region33: #{tpu_custom_call.1} parent=11 // pred_check
          %p275 = pneg %p187
        $region34: #{tpu_custom_call.1} parent=11 // pred_check_branch
          %277 = sbr.rel (%p275) target = $region36
        $region35: #{tpu_custom_call.1} parent=11 // pred_region
          _
        $region36: #{tpu_custom_call.1} parent=11 // pred_fallthru
          _
      $region12: #{tpu_custom_call.1} parent=5 // pred_fallthru
        _
      %p278 = scmp.lt.s32.totalorder %s21, 2
      // Predicated region
      $region37: #{tpu_custom_call.1} parent=5 // pred_check
        %p279 = pneg %p278
      $region38: #{tpu_custom_call.1} parent=5 // pred_check_branch
        %281 = sbr.rel (%p279) target = $region40
      $region39: #{tpu_custom_call.1} parent=5 // pred_region
        // Predicated region
        $region41: #{tpu_custom_call.1} parent=39 // pred_check
          %p282 = pneg %p55
        $region42: #{tpu_custom_call.1} parent=39 // pred_check_branch
          %284 = sbr.rel (%p282) target = $region44
        $region43: #{tpu_custom_call.1} parent=39 // pred_region
          %s285 = sand.u32 %s45, 1
          %s286 = scalar_lea.sflag [#allocation7], %s285
          %s287 = sand.u32 %s45, 1
          %s288 = smul.addr %s287, 8
          %s289 = scalar_lea.vmem [#allocation6], %s288
          %s290 = smul.u32 2, %s29
          %s292 = ssub.s32 128, 128
          %293 = vsyncadd %s286, %s292
          %s294 = smul.addr %s28, 2
          %s295 = sadd.s32 %s290, %s294
          %s296 = smul.addr %s295, 64
          %s297 = scalar_lea.hbm %s0, %s296
          %s298 = sshll.u32 %s289, 4
          %s299 = int_to_ptr.vmem [resolvable:$true] %s298
          %304 = dma.hbm_to_vmem [thread:$0]  %s297, 128, %s299, %s286, 64, 64, 4
        $region44: #{tpu_custom_call.1} parent=39 // pred_fallthru
          _
      $region40: #{tpu_custom_call.1} parent=5 // pred_fallthru
        _
      %p305 = scmp.le.s32.totalorder 1, %s21
      %p306 = scmp.lt.s32.totalorder %s21, 3
      %p307 = pnand %p305, %p306
      %p308 = pneg %p307
      // Predicated region
      $region45: #{tpu_custom_call.1} parent=5 // pred_check
        _
      $region46: #{tpu_custom_call.1} parent=5 // pred_check_branch
        %310 = sbr.rel (%p307) target = $region48
      $region47: #{tpu_custom_call.1} parent=5 // pred_region
        %s311 = ssub.s32 %s21, 1
        %s312 = sand.u32 %s48, 1
        %s313 = scalar_lea.sflag [#allocation7], %s312
        %s314 = sand.u32 %s48, 1
        %s315 = smul.addr %s314, 8
        %s316 = scalar_lea.vmem [#allocation6], %s315
        // Predicated region
        $region49: #{tpu_custom_call.1} parent=47 // pred_check
          %p317 = pneg %p61
        $region50: #{tpu_custom_call.1} parent=47 // pred_check_branch
          %319 = sbr.rel (%p317) target = $region52
        $region51: #{tpu_custom_call.1} parent=47 // pred_region
          %320 = dma.done %s313, 128
        $region52: #{tpu_custom_call.1} parent=47 // pred_fallthru
          _
        // Predicated region
        $region53: #{tpu_custom_call.1} parent=47 // pred_check
          %p321 = pneg %p82
        $region54: #{tpu_custom_call.1} parent=47 // pred_check_branch
          %323 = sbr.rel (%p321) target = $region56
        $region55: #{tpu_custom_call.1} parent=47 // pred_region
          %324 = dma.done [#allocation10], 3072
        $region56: #{tpu_custom_call.1} parent=47 // pred_fallthru
          _
        // Predicated region
        $region57: #{tpu_custom_call.1} parent=47 // pred_check
          %p325 = pneg %p124
        $region58: #{tpu_custom_call.1} parent=47 // pred_check_branch
          %327 = sbr.rel (%p325) target = $region60
        $region59: #{tpu_custom_call.1} parent=47 // pred_region
          %328 = dma.done [#allocation10], 3072
        $region60: #{tpu_custom_call.1} parent=47 // pred_fallthru
          _
        // Predicated region
        $region61: #{tpu_custom_call.1} parent=47 // pred_check
          %p329 = pneg %p166
        $region62: #{tpu_custom_call.1} parent=47 // pred_check_branch
          %331 = sbr.rel (%p329) target = $region64
        $region63: #{tpu_custom_call.1} parent=47 // pred_region
          %332 = dma.done [#allocation13], 1024
        $region64: #{tpu_custom_call.1} parent=47 // pred_fallthru
          _
        %s333 = sand.u32 %s48, 1
        %s334 = scalar_lea.sflag [#allocation7], %s333
        %s335 = sand.u32 %s48, 1
        %s336 = smul.addr %s335, 8
        %s337 = scalar_lea.vmem [#allocation6], %s336
        %p338 = pneg %p61
        %p339 = pneg %p58
        %p340 = pneg %p82
        %p341 = pneg %p79
        %p342 = pneg %p103
        %p343 = pneg %p100
        %p344 = pneg %p124
        %p345 = pneg %p121
        %p346 = pneg %p145
        %p347 = pneg %p142
        %p348 = pneg %p166
        %p349 = pneg %p163
        %p350 = pneg %p187
        %p351 = pneg %p184
        %p352 = pneg %p215
        %p353 = pneg %p212
        %s354 = sand.u32 %s202, 1
        %s355 = scalar_lea.sflag [#allocation8], %s354
        %s356 = sand.u32 %s202, 1
        %s357 = smul.addr %s356, 8
        %s358 = scalar_lea.vmem [#allocation14], %s357
        %s359 = smul.u32 2, %s31
        %s360 = smul.u32 2, %s31
        %v362 = vld [vmem:[%s316] sm:$0xf]
        %v363 = vld [vmem:[%s316 + $0x4] sm:$0xf]
        %p364 = scmp.eq.s32.totalorder %s31, 0
        // Predicated region
        $region65: #{tpu_custom_call.1} parent=47 // pred_check
          %p365 = pneg %p364
        $region66: #{tpu_custom_call.1} parent=47 // pred_check_branch
          %367 = sbr.rel (%p365) target = $region68
        $region67: #{tpu_custom_call.1} parent=47 // pred_region
          %368 = vst [vmem:[#allocation2] sm:$0xf] 0
          %369 = vst [vmem:[#allocation2 + $0x4] sm:$0xf] 0
          %370 = vst [vmem:[#allocation3] sm:$0xf] 0
          %371 = vst [vmem:[#allocation3 + $0x4] sm:$0xf] 0
        $region68: #{tpu_custom_call.1} parent=47 // pred_fallthru
          _
        %372 = vst [vmem:[#allocation2 + $0x8] sm:$0xf] %v362
        %373 = vst [vmem:[#allocation2 + $0xc] sm:$0xf] %v363
        %374 = vst [vmem:[#allocation4 + $0x8] sm:$0xf] %v362
        %375 = vst [vmem:[#allocation4 + $0x14] sm:$0xf] %v363
        %v376 = vld [vmem:[#allocation2 + $0x4] sm:$0xc]
        %v377 = vld [vmem:[#allocation2 + $0x8] sm:$0xf]
        %v378 = vld [vmem:[#allocation2 + $0xc] sm:$0x3]
        %vm382 = vcmask 1041408
        %vm383 = vcmask 1045508
        %vm384 = vmor %vm382, %vm383
        %v385 = vrot.slane %v376, 6
        %v386 = vrot.slane %v385, 4
        %v387 = vrot.slane %v377, 6
        %v388 = vsel %vm384, %v386, %v387
        %v389 = vrot.slane %v387, 4
        %v390 = vrot.slane %v378, 6
        %v391 = vsel %vm384, %v389, %v390
        %394 = vst [vmem:[#allocation4] sm:$0xf] %v388
        %395 = vst [vmem:[#allocation4 + $0xc] sm:$0xf] %v391
        %v396 = vld [vmem:[#allocation2 + $0x4] sm:$0x8]
        %v397 = vld [vmem:[#allocation2 + $0x8] sm:$0xf]
        %v398 = vld [vmem:[#allocation2 + $0xc] sm:$0x7]
        %vm402 = vcmask 1040384
        %vm403 = vcmask 1044484
        %vm404 = vmor %vm402, %vm403
        %v405 = vrot.slane %v396, 7
        %v406 = vrot.slane %v405, 4
        %v407 = vrot.slane %v397, 7
        %v408 = vsel %vm404, %v406, %v407
        %v409 = vrot.slane %v407, 4
        %v410 = vrot.slane %v398, 7
        %v411 = vsel %vm404, %v409, %v410
        %414 = vst [vmem:[#allocation4 + $0x4] sm:$0xf] %v408
        %415 = vst [vmem:[#allocation4 + $0x10] sm:$0xf] %v411
        %v416 = vld [vmem:[#allocation4] sm:$0xff]
        %v417 = vld [vmem:[#allocation4 + $0x8] sm:$0xf]
        %v418 = vld [vmem:[#allocation4 + $0xc] sm:$0xff]
        %v419 = vld [vmem:[#allocation4 + $0x14] sm:$0xf]
        %v420 = vld [vmem:[#allocation9] sm:$0xf]
        %v421 = vld [vmem:[#allocation9 + $0x4] sm:$0xf]
        %v422 = vld [vmem:[#allocation9 + $0x8] sm:$0xf]
        %v423 = vld [vmem:[#allocation9 + $0xc] sm:$0xf]
        %v424 = vld [vmem:[#allocation9 + $0x10] sm:$0xf]
        %v425 = vld [vmem:[#allocation9 + $0x14] sm:$0xf]
        %v426 = vld [vmem:[#allocation9 + $0x18] sm:$0xf]
        %v427 = vld [vmem:[#allocation9 + $0x1c] sm:$0xf]
        %v428 = vld [vmem:[#allocation9 + $0x20] sm:$0xf]
        %v429 = vld [vmem:[#allocation9 + $0x24] sm:$0xf]
        %v430 = vld [vmem:[#allocation9 + $0x28] sm:$0xf]
        %v431 = vld [vmem:[#allocation9 + $0x2c] sm:$0xf]
        %v432 = vld [vmem:[#allocation9 + $0x30] sm:$0xf]
        %v433 = vld [vmem:[#allocation9 + $0x34] sm:$0xf]
        %v434 = vld [vmem:[#allocation9 + $0x38] sm:$0xf]
        %v435 = vld [vmem:[#allocation9 + $0x3c] sm:$0xf]
        %v436 = vld [vmem:[#allocation9 + $0x40] sm:$0xf]
        %v437 = vld [vmem:[#allocation9 + $0x44] sm:$0xf]
        %v438 = vld [vmem:[#allocation9 + $0x48] sm:$0xf]
        %v439 = vld [vmem:[#allocation9 + $0x4c] sm:$0xf]
        %v440 = vld [vmem:[#allocation9 + $0x50] sm:$0xf]
        %v441 = vld [vmem:[#allocation9 + $0x54] sm:$0xf]
        %v442 = vld [vmem:[#allocation9 + $0x58] sm:$0xf]
        %v443 = vld [vmem:[#allocation9 + $0x5c] sm:$0xf]
        %v444 = vld [vmem:[#allocation9 + $0x60] sm:$0xf]
        %v445 = vld [vmem:[#allocation9 + $0x64] sm:$0xf]
        %v446 = vld [vmem:[#allocation9 + $0x68] sm:$0xf]
        %v447 = vld [vmem:[#allocation9 + $0x6c] sm:$0xf]
        %v448 = vld [vmem:[#allocation9 + $0x70] sm:$0xf]
        %v449 = vld [vmem:[#allocation9 + $0x74] sm:$0xf]
        %v450 = vld [vmem:[#allocation9 + $0x78] sm:$0xf]
        %v451 = vld [vmem:[#allocation9 + $0x7c] sm:$0xf]
        %v452 = vld [vmem:[#allocation9 + $0x80] sm:$0xf]
        %v453 = vld [vmem:[#allocation9 + $0x84] sm:$0xf]
        %v454 = vld [vmem:[#allocation9 + $0x88] sm:$0xf]
        %v455 = vld [vmem:[#allocation9 + $0x8c] sm:$0xf]
        %v456 = vld [vmem:[#allocation9 + $0x90] sm:$0xf]
        %v457 = vld [vmem:[#allocation9 + $0x94] sm:$0xf]
        %v458 = vld [vmem:[#allocation9 + $0x98] sm:$0xf]
        %v459 = vld [vmem:[#allocation9 + $0x9c] sm:$0xf]
        %v460 = vld [vmem:[#allocation9 + $0xa0] sm:$0xf]
        %v461 = vld [vmem:[#allocation9 + $0xa4] sm:$0xf]
        %v462 = vld [vmem:[#allocation9 + $0xa8] sm:$0xf]
        %v463 = vld [vmem:[#allocation9 + $0xac] sm:$0xf]
        %v464 = vld [vmem:[#allocation9 + $0xb0] sm:$0xf]
        %v465 = vld [vmem:[#allocation9 + $0xb4] sm:$0xf]
        %v466 = vld [vmem:[#allocation9 + $0xb8] sm:$0xf]
        %v467 = vld [vmem:[#allocation9 + $0xbc] sm:$0xf]
        %v468 = vld [vmem:[%s2] sm:$0x1]
        %v470 = vlaneseq
        %v471 = vshrl.u32 %v470, 7
        %v472 = vsub.s32 0, %v471
        %v473 = vrot.slane %v468, %v472
        %v479 = vunpack.c.l.b16 %v416
        %v480 = vunpack.c.h.b16 %v416
        %v481 = vunpack.c.l.b16 %v417
        %v482 = vunpack.c.l.b16 %v418
        %v483 = vunpack.c.h.b16 %v418
        %v484 = vunpack.c.l.b16 %v419
        %v485 = vpack.c.b16 %v482, %v479
        %v486 = vpack.c.b16 %v483, %v480
        %v487 = vpack.c.b16 %v484, %v481
        %v539 = vunpack.c.l.b16 %v420
        %v540 = vunpack.c.l.b16 %v421
        %v541 = vunpack.c.l.b16 %v422
        %v542 = vunpack.c.l.b16 %v423
        %v543 = vunpack.c.l.b16 %v424
        %v544 = vunpack.c.l.b16 %v425
        %v545 = vunpack.c.l.b16 %v426
        %v546 = vunpack.c.l.b16 %v427
        %v547 = vunpack.c.l.b16 %v428
        %v548 = vunpack.c.l.b16 %v429
        %v549 = vunpack.c.l.b16 %v430
        %v550 = vunpack.c.l.b16 %v431
        %v551 = vunpack.c.l.b16 %v432
        %v552 = vunpack.c.l.b16 %v433
        %v553 = vunpack.c.l.b16 %v434
        %v554 = vunpack.c.l.b16 %v435
        %v555 = vunpack.c.l.b16 %v436
        %v556 = vunpack.c.l.b16 %v437
        %v557 = vunpack.c.l.b16 %v438
        %v558 = vunpack.c.l.b16 %v439
        %v559 = vunpack.c.l.b16 %v440
        %v560 = vunpack.c.l.b16 %v441
        %v561 = vunpack.c.l.b16 %v442
        %v562 = vunpack.c.l.b16 %v443
        %v563 = vunpack.c.l.b16 %v444
        %v564 = vunpack.c.l.b16 %v445
        %v565 = vunpack.c.l.b16 %v446
        %v566 = vunpack.c.l.b16 %v447
        %v567 = vunpack.c.l.b16 %v448
        %v568 = vunpack.c.l.b16 %v449
        %v569 = vunpack.c.l.b16 %v450
        %v570 = vunpack.c.l.b16 %v451
        %v571 = vunpack.c.l.b16 %v452
        %v572 = vunpack.c.l.b16 %v453
        %v573 = vunpack.c.l.b16 %v454
        %v574 = vunpack.c.l.b16 %v455
        %v575 = vunpack.c.l.b16 %v456
        %v576 = vunpack.c.l.b16 %v457
        %v577 = vunpack.c.l.b16 %v458
        %v578 = vunpack.c.l.b16 %v459
        %v579 = vunpack.c.l.b16 %v460
        %v580 = vunpack.c.l.b16 %v461
        %v581 = vunpack.c.l.b16 %v462
        %v582 = vunpack.c.l.b16 %v463
        %v583 = vunpack.c.l.b16 %v464
        %v584 = vunpack.c.l.b16 %v465
        %v585 = vunpack.c.l.b16 %v466
        %v586 = vunpack.c.l.b16 %v467
        %v587 = vpack.c.b16 %v540, %v539
        %v588 = vpack.c.b16 %v542, %v541
        %v589 = vpack.c.b16 %v544, %v543
        %v590 = vpack.c.b16 %v546, %v545
        %v591 = vpack.c.b16 %v548, %v547
        %v592 = vpack.c.b16 %v550, %v549
        %v593 = vpack.c.b16 %v552, %v551
        %v594 = vpack.c.b16 %v554, %v553
        %v595 = vpack.c.b16 %v556, %v555
        %v596 = vpack.c.b16 %v558, %v557
        %v597 = vpack.c.b16 %v560, %v559
        %v598 = vpack.c.b16 %v562, %v561
        %v599 = vpack.c.b16 %v564, %v563
        %v600 = vpack.c.b16 %v566, %v565
        %v601 = vpack.c.b16 %v568, %v567
        %v602 = vpack.c.b16 %v570, %v569
        %v603 = vpack.c.b16 %v572, %v571
        %v604 = vpack.c.b16 %v574, %v573
        %v605 = vpack.c.b16 %v576, %v575
        %v606 = vpack.c.b16 %v578, %v577
        %v607 = vpack.c.b16 %v580, %v579
        %v608 = vpack.c.b16 %v582, %v581
        %v609 = vpack.c.b16 %v584, %v583
        %v610 = vpack.c.b16 %v586, %v585
        %635 = vmatprep.subr.bf16.mxu0 0
        %636 = vmatpush1.bf16.msra.mxu0 %v594
        %637 = vmatprep.subr.bf16.mxu0 0
        %638 = vmatpush1.bf16.msra.mxu0 %v593
        %639 = vmatprep.subr.bf16.mxu0 0
        %640 = vmatpush1.bf16.msra.mxu0 %v592
        %641 = vmatprep.subr.bf16.mxu0 0
        %642 = vmatpush1.bf16.msra.mxu0 %v591
        %643 = vmatprep.subr.bf16.mxu0 0
        %644 = vmatpush1.bf16.msra.mxu0 %v590
        %645 = vmatprep.subr.bf16.mxu0 0
        %646 = vmatpush1.bf16.msra.mxu0 %v589
        %647 = vmatprep.subr.bf16.mxu0 0
        %648 = vmatpush1.bf16.msra.mxu0 %v588
        %649 = vmatprep.subr.bf16.mxu0 0
        %650 = vmatpush1.bf16.msra.mxu0 %v587
        %651 = vmatprep.subr.bf16.mxu0 0
        %652 = vmatpush2.bf16.msra.mxu0 %v602
        %653 = vmatprep.subr.bf16.mxu0 0
        %654 = vmatpush2.bf16.msra.mxu0 %v601
        %655 = vmatprep.subr.bf16.mxu0 0
        %656 = vmatpush2.bf16.msra.mxu0 %v600
        %657 = vmatprep.subr.bf16.mxu0 0
        %658 = vmatpush2.bf16.msra.mxu0 %v599
        %659 = vmatprep.subr.bf16.mxu0 0
        %660 = vmatpush2.bf16.msra.mxu0 %v598
        %661 = vmatprep.subr.bf16.mxu0 0
        %662 = vmatpush2.bf16.msra.mxu0 %v597
        %663 = vmatprep.subr.bf16.mxu0 0
        %664 = vmatpush2.bf16.msra.mxu0 %v596
        %665 = vmatprep.subr.bf16.mxu0 0
        %666 = vmatpush2.bf16.msra.mxu0 %v595
        %667 = vmatprep.mubr.bf16.mxu0 %v486
        %668 = vmatmul.mubr.bf16.gmra.mxu0 %v485
        %v669 = vpop.f32.mrf.mxu0
        %v670 = vadd.f32 %v473, %v669
        %v671 = vpop.f32.mrf.mxu0
        %v672 = vpop.f32.mrf.mxu0
        %v673 = vadd.f32 %v473, %v672
        %v674 = vpop.f32.mrf.mxu0
        %675 = vdwg.mxu0
        %676 = vmatprep.subr.bf16.mxu0 0
        %677 = vmatpush1.bf16.msra.mxu0 %v610
        %678 = vmatprep.subr.bf16.mxu0 0
        %679 = vmatpush1.bf16.msra.mxu0 %v609
        %680 = vmatprep.subr.bf16.mxu0 0
        %681 = vmatpush1.bf16.msra.mxu0 %v608
        %682 = vmatprep.subr.bf16.mxu0 0
        %683 = vmatpush1.bf16.msra.mxu0 %v607
        %684 = vmatprep.subr.bf16.mxu0 0
        %685 = vmatpush1.bf16.msra.mxu0 %v606
        %686 = vmatprep.subr.bf16.mxu0 0
        %687 = vmatpush1.bf16.msra.mxu0 %v605
        %688 = vmatprep.subr.bf16.mxu0 0
        %689 = vmatpush1.bf16.msra.mxu0 %v604
        %690 = vmatprep.subr.bf16.mxu0 0
        %691 = vmatpush1.bf16.msra.mxu0 %v603
        %692 = vmatprep.subr.bf16.mxu0 0
        %693 = vmatpush2.bf16.msra.mxu0 0
        %694 = vmatprep.subr.bf16.mxu0 0
        %695 = vmatpush2.bf16.msra.mxu0 0
        %696 = vmatprep.subr.bf16.mxu0 0
        %697 = vmatpush2.bf16.msra.mxu0 0
        %698 = vmatprep.subr.bf16.mxu0 0
        %699 = vmatpush2.bf16.msra.mxu0 0
        %700 = vmatprep.subr.bf16.mxu0 0
        %701 = vmatpush2.bf16.msra.mxu0 0
        %702 = vmatprep.subr.bf16.mxu0 0
        %703 = vmatpush2.bf16.msra.mxu0 0
        %704 = vmatprep.subr.bf16.mxu0 0
        %705 = vmatpush2.bf16.msra.mxu0 0
        %706 = vmatprep.subr.bf16.mxu0 0
        %707 = vmatpush2.bf16.msra.mxu0 0
        %708 = vmatprep.mubr.bf16.mxu0 0
        %709 = vmatmul.mubr.bf16.gmra.mxu0 %v487
        %v710 = vpop.f32.mrf.mxu0
        %v711 = vadd.f32 %v670, %v710
        %v712 = vpop.f32.mrf.mxu0
        %v713 = vpop.f32.mrf.mxu0
        %v714 = vadd.f32 %v673, %v713
        %v715 = vpop.f32.mrf.mxu0
        %716 = vdwg.mxu0
        %v717 = vmax.f32 %v711, 0.0
        %v718 = vmax.f32 %v714, 0.0
        %v719 = vpack.c.bf16 %v718, %v717
        %v721 = vunpack.c.l.b16 %v719
        %v722 = vunpack.c.h.b16 %v719
        %v723 = vpack.c.b16 %v721, %v721
        %v724 = vpack.c.b16 %v722, %v722
        %727 = vst [vmem:[#allocation3 + $0x8] sm:$0xf] %v723
        %728 = vst [vmem:[#allocation3 + $0xc] sm:$0xf] %v724
        %729 = vst [vmem:[#allocation5 + $0x8] sm:$0xf] %v723
        %730 = vst [vmem:[#allocation5 + $0x14] sm:$0xf] %v724
        %v731 = vld [vmem:[#allocation3 + $0x4] sm:$0xc]
        %v732 = vld [vmem:[#allocation3 + $0x8] sm:$0xf]
        %v733 = vld [vmem:[#allocation3 + $0xc] sm:$0x3]
        %v737 = vrot.slane %v731, 6
        %v738 = vrot.slane %v737, 4
        %v739 = vrot.slane %v732, 6
        %v740 = vsel %vm384, %v738, %v739
        %v741 = vrot.slane %v739, 4
        %v742 = vrot.slane %v733, 6
        %v743 = vsel %vm384, %v741, %v742
        %746 = vst [vmem:[#allocation5] sm:$0xf] %v740
        %747 = vst [vmem:[#allocation5 + $0xc] sm:$0xf] %v743
        %v748 = vld [vmem:[#allocation3 + $0x4] sm:$0x8]
        %v749 = vld [vmem:[#allocation3 + $0x8] sm:$0xf]
        %v750 = vld [vmem:[#allocation3 + $0xc] sm:$0x7]
        %v754 = vrot.slane %v748, 7
        %v755 = vrot.slane %v754, 4
        %v756 = vrot.slane %v749, 7
        %v757 = vsel %vm404, %v755, %v756
        %v758 = vrot.slane %v756, 4
        %v759 = vrot.slane %v750, 7
        %v760 = vsel %vm404, %v758, %v759
        %763 = vst [vmem:[#allocation5 + $0x4] sm:$0xf] %v757
        %764 = vst [vmem:[#allocation5 + $0x10] sm:$0xf] %v760
        %v765 = vld [vmem:[#allocation5] sm:$0xff]
        %v766 = vld [vmem:[#allocation5 + $0x8] sm:$0xf]
        %v767 = vld [vmem:[#allocation5 + $0xc] sm:$0xff]
        %v768 = vld [vmem:[#allocation5 + $0x14] sm:$0xf]
        %v769 = vld [vmem:[#allocation11] sm:$0xf]
        %v770 = vld [vmem:[#allocation11 + $0x4] sm:$0xf]
        %v771 = vld [vmem:[#allocation11 + $0x8] sm:$0xf]
        %v772 = vld [vmem:[#allocation11 + $0xc] sm:$0xf]
        %v773 = vld [vmem:[#allocation11 + $0x10] sm:$0xf]
        %v774 = vld [vmem:[#allocation11 + $0x14] sm:$0xf]
        %v775 = vld [vmem:[#allocation11 + $0x18] sm:$0xf]
        %v776 = vld [vmem:[#allocation11 + $0x1c] sm:$0xf]
        %v777 = vld [vmem:[#allocation11 + $0x20] sm:$0xf]
        %v778 = vld [vmem:[#allocation11 + $0x24] sm:$0xf]
        %v779 = vld [vmem:[#allocation11 + $0x28] sm:$0xf]
        %v780 = vld [vmem:[#allocation11 + $0x2c] sm:$0xf]
        %v781 = vld [vmem:[#allocation11 + $0x30] sm:$0xf]
        %v782 = vld [vmem:[#allocation11 + $0x34] sm:$0xf]
        %v783 = vld [vmem:[#allocation11 + $0x38] sm:$0xf]
        %v784 = vld [vmem:[#allocation11 + $0x3c] sm:$0xf]
        %v785 = vld [vmem:[#allocation11 + $0x40] sm:$0xf]
        %v786 = vld [vmem:[#allocation11 + $0x44] sm:$0xf]
        %v787 = vld [vmem:[#allocation11 + $0x48] sm:$0xf]
        %v788 = vld [vmem:[#allocation11 + $0x4c] sm:$0xf]
        %v789 = vld [vmem:[#allocation11 + $0x50] sm:$0xf]
        %v790 = vld [vmem:[#allocation11 + $0x54] sm:$0xf]
        %v791 = vld [vmem:[#allocation11 + $0x58] sm:$0xf]
        %v792 = vld [vmem:[#allocation11 + $0x5c] sm:$0xf]
        %v793 = vld [vmem:[#allocation11 + $0x60] sm:$0xf]
        %v794 = vld [vmem:[#allocation11 + $0x64] sm:$0xf]
        %v795 = vld [vmem:[#allocation11 + $0x68] sm:$0xf]
        %v796 = vld [vmem:[#allocation11 + $0x6c] sm:$0xf]
        %v797 = vld [vmem:[#allocation11 + $0x70] sm:$0xf]
        %v798 = vld [vmem:[#allocation11 + $0x74] sm:$0xf]
        %v799 = vld [vmem:[#allocation11 + $0x78] sm:$0xf]
        %v800 = vld [vmem:[#allocation11 + $0x7c] sm:$0xf]
        %v801 = vld [vmem:[#allocation11 + $0x80] sm:$0xf]
        %v802 = vld [vmem:[#allocation11 + $0x84] sm:$0xf]
        %v803 = vld [vmem:[#allocation11 + $0x88] sm:$0xf]
        %v804 = vld [vmem:[#allocation11 + $0x8c] sm:$0xf]
        %v805 = vld [vmem:[#allocation11 + $0x90] sm:$0xf]
        %v806 = vld [vmem:[#allocation11 + $0x94] sm:$0xf]
        %v807 = vld [vmem:[#allocation11 + $0x98] sm:$0xf]
        %v808 = vld [vmem:[#allocation11 + $0x9c] sm:$0xf]
        %v809 = vld [vmem:[#allocation11 + $0xa0] sm:$0xf]
        %v810 = vld [vmem:[#allocation11 + $0xa4] sm:$0xf]
        %v811 = vld [vmem:[#allocation11 + $0xa8] sm:$0xf]
        %v812 = vld [vmem:[#allocation11 + $0xac] sm:$0xf]
        %v813 = vld [vmem:[#allocation11 + $0xb0] sm:$0xf]
        %v814 = vld [vmem:[#allocation11 + $0xb4] sm:$0xf]
        %v815 = vld [vmem:[#allocation11 + $0xb8] sm:$0xf]
        %v816 = vld [vmem:[#allocation11 + $0xbc] sm:$0xf]
        %v817 = vld [vmem:[%s4] sm:$0x1]
        %v819 = vlaneseq
        %v820 = vshrl.u32 %v819, 7
        %v821 = vsub.s32 0, %v820
        %v822 = vrot.slane %v817, %v821
        %v828 = vunpack.c.l.b16 %v765
        %v829 = vunpack.c.h.b16 %v765
        %v830 = vunpack.c.l.b16 %v766
        %v831 = vunpack.c.l.b16 %v767
        %v832 = vunpack.c.h.b16 %v767
        %v833 = vunpack.c.l.b16 %v768
        %v834 = vpack.c.b16 %v831, %v828
        %v835 = vpack.c.b16 %v832, %v829
        %v836 = vpack.c.b16 %v833, %v830
        %v888 = vunpack.c.l.b16 %v769
        %v889 = vunpack.c.l.b16 %v770
        %v890 = vunpack.c.l.b16 %v771
        %v891 = vunpack.c.l.b16 %v772
        %v892 = vunpack.c.l.b16 %v773
        %v893 = vunpack.c.l.b16 %v774
        %v894 = vunpack.c.l.b16 %v775
        %v895 = vunpack.c.l.b16 %v776
        %v896 = vunpack.c.l.b16 %v777
        %v897 = vunpack.c.l.b16 %v778
        %v898 = vunpack.c.l.b16 %v779
        %v899 = vunpack.c.l.b16 %v780
        %v900 = vunpack.c.l.b16 %v781
        %v901 = vunpack.c.l.b16 %v782
        %v902 = vunpack.c.l.b16 %v783
        %v903 = vunpack.c.l.b16 %v784
        %v904 = vunpack.c.l.b16 %v785
        %v905 = vunpack.c.l.b16 %v786
        %v906 = vunpack.c.l.b16 %v787
        %v907 = vunpack.c.l.b16 %v788
        %v908 = vunpack.c.l.b16 %v789
        %v909 = vunpack.c.l.b16 %v790
        %v910 = vunpack.c.l.b16 %v791
        %v911 = vunpack.c.l.b16 %v792
        %v912 = vunpack.c.l.b16 %v793
        %v913 = vunpack.c.l.b16 %v794
        %v914 = vunpack.c.l.b16 %v795
        %v915 = vunpack.c.l.b16 %v796
        %v916 = vunpack.c.l.b16 %v797
        %v917 = vunpack.c.l.b16 %v798
        %v918 = vunpack.c.l.b16 %v799
        %v919 = vunpack.c.l.b16 %v800
        %v920 = vunpack.c.l.b16 %v801
        %v921 = vunpack.c.l.b16 %v802
        %v922 = vunpack.c.l.b16 %v803
        %v923 = vunpack.c.l.b16 %v804
        %v924 = vunpack.c.l.b16 %v805
        %v925 = vunpack.c.l.b16 %v806
        %v926 = vunpack.c.l.b16 %v807
        %v927 = vunpack.c.l.b16 %v808
        %v928 = vunpack.c.l.b16 %v809
        %v929 = vunpack.c.l.b16 %v810
        %v930 = vunpack.c.l.b16 %v811
        %v931 = vunpack.c.l.b16 %v812
        %v932 = vunpack.c.l.b16 %v813
        %v933 = vunpack.c.l.b16 %v814
        %v934 = vunpack.c.l.b16 %v815
        %v935 = vunpack.c.l.b16 %v816
        %v936 = vpack.c.b16 %v889, %v888
        %v937 = vpack.c.b16 %v891, %v890
        %v938 = vpack.c.b16 %v893, %v892
        %v939 = vpack.c.b16 %v895, %v894
        %v940 = vpack.c.b16 %v897, %v896
        %v941 = vpack.c.b16 %v899, %v898
        %v942 = vpack.c.b16 %v901, %v900
        %v943 = vpack.c.b16 %v903, %v902
        %v944 = vpack.c.b16 %v905, %v904
        %v945 = vpack.c.b16 %v907, %v906
        %v946 = vpack.c.b16 %v909, %v908
        %v947 = vpack.c.b16 %v911, %v910
        %v948 = vpack.c.b16 %v913, %v912
        %v949 = vpack.c.b16 %v915, %v914
        %v950 = vpack.c.b16 %v917, %v916
        %v951 = vpack.c.b16 %v919, %v918
        %v952 = vpack.c.b16 %v921, %v920
        %v953 = vpack.c.b16 %v923, %v922
        %v954 = vpack.c.b16 %v925, %v924
        %v955 = vpack.c.b16 %v927, %v926
        %v956 = vpack.c.b16 %v929, %v928
        %v957 = vpack.c.b16 %v931, %v930
        %v958 = vpack.c.b16 %v933, %v932
        %v959 = vpack.c.b16 %v935, %v934
        %984 = vmatprep.subr.bf16.mxu0 0
        %985 = vmatpush1.bf16.msra.mxu0 %v943
        %986 = vmatprep.subr.bf16.mxu0 0
        %987 = vmatpush1.bf16.msra.mxu0 %v942
        %988 = vmatprep.subr.bf16.mxu0 0
        %989 = vmatpush1.bf16.msra.mxu0 %v941
        %990 = vmatprep.subr.bf16.mxu0 0
        %991 = vmatpush1.bf16.msra.mxu0 %v940
        %992 = vmatprep.subr.bf16.mxu0 0
        %993 = vmatpush1.bf16.msra.mxu0 %v939
        %994 = vmatprep.subr.bf16.mxu0 0
        %995 = vmatpush1.bf16.msra.mxu0 %v938
        %996 = vmatprep.subr.bf16.mxu0 0
        %997 = vmatpush1.bf16.msra.mxu0 %v937
        %998 = vmatprep.subr.bf16.mxu0 0
        %999 = vmatpush1.bf16.msra.mxu0 %v936
        %1000 = vmatprep.subr.bf16.mxu0 0
        %1001 = vmatpush2.bf16.msra.mxu0 %v951
        %1002 = vmatprep.subr.bf16.mxu0 0
        %1003 = vmatpush2.bf16.msra.mxu0 %v950
        %1004 = vmatprep.subr.bf16.mxu0 0
        %1005 = vmatpush2.bf16.msra.mxu0 %v949
        %1006 = vmatprep.subr.bf16.mxu0 0
        %1007 = vmatpush2.bf16.msra.mxu0 %v948
        %1008 = vmatprep.subr.bf16.mxu0 0
        %1009 = vmatpush2.bf16.msra.mxu0 %v947
        %1010 = vmatprep.subr.bf16.mxu0 0
        %1011 = vmatpush2.bf16.msra.mxu0 %v946
        %1012 = vmatprep.subr.bf16.mxu0 0
        %1013 = vmatpush2.bf16.msra.mxu0 %v945
        %1014 = vmatprep.subr.bf16.mxu0 0
        %1015 = vmatpush2.bf16.msra.mxu0 %v944
        %1016 = vmatprep.mubr.bf16.mxu0 %v835
        %1017 = vmatmul.mubr.bf16.gmra.mxu0 %v834
        %v1018 = vpop.f32.mrf.mxu0
        %v1019 = vadd.f32 %v822, %v1018
        %v1020 = vpop.f32.mrf.mxu0
        %v1021 = vpop.f32.mrf.mxu0
        %v1022 = vadd.f32 %v822, %v1021
        %v1023 = vpop.f32.mrf.mxu0
        %1024 = vdwg.mxu0
        %1025 = vmatprep.subr.bf16.mxu0 0
        %1026 = vmatpush1.bf16.msra.mxu0 %v959
        %1027 = vmatprep.subr.bf16.mxu0 0
        %1028 = vmatpush1.bf16.msra.mxu0 %v958
        %1029 = vmatprep.subr.bf16.mxu0 0
        %1030 = vmatpush1.bf16.msra.mxu0 %v957
        %1031 = vmatprep.subr.bf16.mxu0 0
        %1032 = vmatpush1.bf16.msra.mxu0 %v956
        %1033 = vmatprep.subr.bf16.mxu0 0
        %1034 = vmatpush1.bf16.msra.mxu0 %v955
        %1035 = vmatprep.subr.bf16.mxu0 0
        %1036 = vmatpush1.bf16.msra.mxu0 %v954
        %1037 = vmatprep.subr.bf16.mxu0 0
        %1038 = vmatpush1.bf16.msra.mxu0 %v953
        %1039 = vmatprep.subr.bf16.mxu0 0
        %1040 = vmatpush1.bf16.msra.mxu0 %v952
        %1041 = vmatprep.subr.bf16.mxu0 0
        %1042 = vmatpush2.bf16.msra.mxu0 0
        %1043 = vmatprep.subr.bf16.mxu0 0
        %1044 = vmatpush2.bf16.msra.mxu0 0
        %1045 = vmatprep.subr.bf16.mxu0 0
        %1046 = vmatpush2.bf16.msra.mxu0 0
        %1047 = vmatprep.subr.bf16.mxu0 0
        %1048 = vmatpush2.bf16.msra.mxu0 0
        %1049 = vmatprep.subr.bf16.mxu0 0
        %1050 = vmatpush2.bf16.msra.mxu0 0
        %1051 = vmatprep.subr.bf16.mxu0 0
        %1052 = vmatpush2.bf16.msra.mxu0 0
        %1053 = vmatprep.subr.bf16.mxu0 0
        %1054 = vmatpush2.bf16.msra.mxu0 0
        %1055 = vmatprep.subr.bf16.mxu0 0
        %1056 = vmatpush2.bf16.msra.mxu0 0
        %1057 = vmatprep.mubr.bf16.mxu0 0
        %1058 = vmatmul.mubr.bf16.gmra.mxu0 %v836
        %v1059 = vpop.f32.mrf.mxu0
        %v1060 = vadd.f32 %v1019, %v1059
        %v1061 = vpop.f32.mrf.mxu0
        %v1062 = vpop.f32.mrf.mxu0
        %v1063 = vadd.f32 %v1022, %v1062
        %v1064 = vpop.f32.mrf.mxu0
        %1065 = vdwg.mxu0
        %v1066 = vmax.f32 %v1060, 0.0
        %v1067 = vmax.f32 %v1063, 0.0
        %v1068 = vld [vmem:[#allocation12] sm:$0xf]
        %v1069 = vld [vmem:[#allocation12 + $0x4] sm:$0xf]
        %v1070 = vld [vmem:[#allocation12 + $0x8] sm:$0xf]
        %v1071 = vld [vmem:[#allocation12 + $0xc] sm:$0xf]
        %v1072 = vld [vmem:[#allocation12 + $0x10] sm:$0xf]
        %v1073 = vld [vmem:[#allocation12 + $0x14] sm:$0xf]
        %v1074 = vld [vmem:[#allocation12 + $0x18] sm:$0xf]
        %v1075 = vld [vmem:[#allocation12 + $0x1c] sm:$0xf]
        %v1076 = vld [vmem:[#allocation12 + $0x20] sm:$0xf]
        %v1077 = vld [vmem:[#allocation12 + $0x24] sm:$0xf]
        %v1078 = vld [vmem:[#allocation12 + $0x28] sm:$0xf]
        %v1079 = vld [vmem:[#allocation12 + $0x2c] sm:$0xf]
        %v1080 = vld [vmem:[#allocation12 + $0x30] sm:$0xf]
        %v1081 = vld [vmem:[#allocation12 + $0x34] sm:$0xf]
        %v1082 = vld [vmem:[#allocation12 + $0x38] sm:$0xf]
        %v1083 = vld [vmem:[#allocation12 + $0x3c] sm:$0xf]
        %v1084 = vld [vmem:[%s6] sm:$0x1]
        %v1086 = vlaneseq
        %v1087 = vshrl.u32 %v1086, 7
        %v1088 = vsub.s32 0, %v1087
        %v1089 = vrot.slane %v1084, %v1088
        %v1093 = vunpack.c.l.b16 %v362
        %v1094 = vunpack.c.l.b16 %v363
        %v1095 = vpack.c.b16 %v1094, %v1093
        %v1113 = vunpack.c.l.b16 %v1068
        %v1114 = vunpack.c.l.b16 %v1069
        %v1115 = vunpack.c.l.b16 %v1070
        %v1116 = vunpack.c.l.b16 %v1071
        %v1117 = vunpack.c.l.b16 %v1072
        %v1118 = vunpack.c.l.b16 %v1073
        %v1119 = vunpack.c.l.b16 %v1074
        %v1120 = vunpack.c.l.b16 %v1075
        %v1121 = vunpack.c.l.b16 %v1076
        %v1122 = vunpack.c.l.b16 %v1077
        %v1123 = vunpack.c.l.b16 %v1078
        %v1124 = vunpack.c.l.b16 %v1079
        %v1125 = vunpack.c.l.b16 %v1080
        %v1126 = vunpack.c.l.b16 %v1081
        %v1127 = vunpack.c.l.b16 %v1082
        %v1128 = vunpack.c.l.b16 %v1083
        %v1129 = vpack.c.b16 %v1114, %v1113
        %v1130 = vpack.c.b16 %v1116, %v1115
        %v1131 = vpack.c.b16 %v1118, %v1117
        %v1132 = vpack.c.b16 %v1120, %v1119
        %v1133 = vpack.c.b16 %v1122, %v1121
        %v1134 = vpack.c.b16 %v1124, %v1123
        %v1135 = vpack.c.b16 %v1126, %v1125
        %v1136 = vpack.c.b16 %v1128, %v1127
        %1145 = vmatprep.subr.bf16.mxu0 0
        %1146 = vmatpush1.bf16.msra.mxu0 %v1136
        %1147 = vmatprep.subr.bf16.mxu0 0
        %1148 = vmatpush1.bf16.msra.mxu0 %v1135
        %1149 = vmatprep.subr.bf16.mxu0 0
        %1150 = vmatpush1.bf16.msra.mxu0 %v1134
        %1151 = vmatprep.subr.bf16.mxu0 0
        %1152 = vmatpush1.bf16.msra.mxu0 %v1133
        %1153 = vmatprep.subr.bf16.mxu0 0
        %1154 = vmatpush1.bf16.msra.mxu0 %v1132
        %1155 = vmatprep.subr.bf16.mxu0 0
        %1156 = vmatpush1.bf16.msra.mxu0 %v1131
        %1157 = vmatprep.subr.bf16.mxu0 0
        %1158 = vmatpush1.bf16.msra.mxu0 %v1130
        %1159 = vmatprep.subr.bf16.mxu0 0
        %1160 = vmatpush1.bf16.msra.mxu0 %v1129
        %1161 = vmatprep.subr.bf16.mxu0 0
        %1162 = vmatpush2.bf16.msra.mxu0 0
        %1163 = vmatprep.subr.bf16.mxu0 0
        %1164 = vmatpush2.bf16.msra.mxu0 0
        %1165 = vmatprep.subr.bf16.mxu0 0
        %1166 = vmatpush2.bf16.msra.mxu0 0
        %1167 = vmatprep.subr.bf16.mxu0 0
        %1168 = vmatpush2.bf16.msra.mxu0 0
        %1169 = vmatprep.subr.bf16.mxu0 0
        %1170 = vmatpush2.bf16.msra.mxu0 0
        %1171 = vmatprep.subr.bf16.mxu0 0
        %1172 = vmatpush2.bf16.msra.mxu0 0
        %1173 = vmatprep.subr.bf16.mxu0 0
        %1174 = vmatpush2.bf16.msra.mxu0 0
        %1175 = vmatprep.subr.bf16.mxu0 0
        %1176 = vmatpush2.bf16.msra.mxu0 0
        %1177 = vmatprep.mubr.bf16.mxu0 0
        %1178 = vmatmul.mubr.bf16.gmra.mxu0 %v1095
        %v1179 = vpop.f32.mrf.mxu0
        %v1180 = vadd.f32 %v1089, %v1179
        %v1181 = vpop.f32.mrf.mxu0
        %v1182 = vpop.f32.mrf.mxu0
        %v1183 = vadd.f32 %v1089, %v1182
        %v1184 = vpop.f32.mrf.mxu0
        %1185 = vdwg.mxu0
        %v1186 = vadd.f32 %v1066, %v1180
        %v1187 = vadd.f32 %v1067, %v1183
        %v1188 = vmax.f32 %v1186, 0.0
        %v1189 = vmax.f32 %v1187, 0.0
        %v1190 = vpack.c.bf16 %v1189, %v1188
        %v1192 = vunpack.c.l.b16 %v1190
        %v1193 = vunpack.c.h.b16 %v1190
        %v1194 = vpack.c.b16 %v1192, %v1192
        %v1195 = vpack.c.b16 %v1193, %v1193
        %1198 = vst [vmem:[%s358] sm:$0xf] %v1194
        %1199 = vst [vmem:[%s358 + $0x4] sm:$0xf] %v1195
        %s1200 = sand.u32 %s202, 1
        %s1201 = scalar_lea.sflag [#allocation8], %s1200
        %s1202 = sand.u32 %s202, 1
        %s1203 = smul.addr %s1202, 8
        %s1204 = scalar_lea.vmem [#allocation14], %s1203
        // Predicated region
        $region69: #{tpu_custom_call.1} parent=47 // pred_check
          %p1205 = pneg %p212
        $region70: #{tpu_custom_call.1} parent=47 // pred_check_branch
          %1207 = sbr.rel (%p1205) target = $region72
        $region71: #{tpu_custom_call.1} parent=47 // pred_region
          %s1208 = smul.u32 2, %s31
          %s1210 = ssub.s32 128, 128
          %1211 = vsyncadd %s1201, %s1210
          %s1212 = smul.addr %s30, 2
          %s1213 = sadd.s32 %s1208, %s1212
          %s1214 = smul.addr %s1213, 64
          %s1215 = scalar_lea.hbm %s7, %s1214
          %s1216 = sshll.u32 %s1204, 4
          %s1217 = int_to_ptr.vmem [resolvable:$true] %s1216
          %1222 = dma.vmem_to_hbm [thread:$0]  %s1217, 128, %s1215, %s1201, 64, 64, 4
        $region72: #{tpu_custom_call.1} parent=47 // pred_fallthru
          _
      $region48: #{tpu_custom_call.1} parent=5 // pred_fallthru
        _
      %p1223 = scmp.le.s32.totalorder 2, %s21
      // Predicated region
      $region73: #{tpu_custom_call.1} parent=5 // pred_check
        %p1224 = pneg %p1223
      $region74: #{tpu_custom_call.1} parent=5 // pred_check_branch
        %1226 = sbr.rel (%p1224) target = $region76
      $region75: #{tpu_custom_call.1} parent=5 // pred_region
        %s1227 = ssub.s32 %s21, 2
        // Predicated region
        $region77: #{tpu_custom_call.1} parent=75 // pred_check
          %p1228 = pneg %p218
        $region78: #{tpu_custom_call.1} parent=75 // pred_check_branch
          %1230 = sbr.rel (%p1228) target = $region80
        $region79: #{tpu_custom_call.1} parent=75 // pred_region
          %s1231 = sand.u32 %s203, 1
          %s1232 = scalar_lea.sflag [#allocation8], %s1231
          %s1233 = sand.u32 %s203, 1
          %s1234 = smul.addr %s1233, 8
          %s1235 = scalar_lea.vmem [#allocation14], %s1234
          %1236 = dma.done %s1232, 128
        $region80: #{tpu_custom_call.1} parent=75 // pred_fallthru
          _
      $region76: #{tpu_custom_call.1} parent=5 // pred_fallthru
        _
    $region6: #{tpu_custom_call.1} parent=1 // loop_footer
      %s25 = sadd.s32 1, %s21
    $region7: #{tpu_custom_call.1} parent=1 // loop_footer_branch
      %20 = sbr.rel target = $region3
    $region8: #{tpu_custom_call.1} parent=1 // loop_exit
      _
    %1237 = vsyncpa [#allocation7], 1
    %s1238 = scalar_lea.sflag [#allocation7], 1
    %1239 = vsyncpa %s1238, 1
    %1240 = vsyncpa [#allocation10], 1
    %1241 = vsyncpa [#allocation13], 1
    %1242 = vsyncpa [#allocation8], 1
    %s1243 = scalar_lea.sflag [#allocation8], 1
    %1244 = vsyncpa %s1243, 1

</llo_original>
